<compile_context>
chip_gen: v6e
topology: v6e:2x2x1
jax: 0.10.0
libtpu: 0.0.40
codegen_flags: <defaults>
</compile_context>

<pallas_src>
import math

import jax
import jax.numpy as jnp
from jax import lax
from jax.experimental import pallas as pl
from jax.experimental.pallas import tpu as pltpu

# ---- small configuration consistent with the module ----
B = 2            # batch
S = 8            # seq_len
D = 32           # model_dim
NH = 4           # num_heads
HD = D // NH     # head_dim = 8
K = 8            # num_splats
BN = D // 2      # bottleneck dim (information_bottleneck=True)
RATIO = 0.4      # splat_attention_ratio
STD_RATIO = 1.0 - RATIO
INV_SQRT_HD = 1.0 / math.sqrt(HD)


# ---------------------------------------------------------------------------
# Single fused kernel: splat flow + multi-head attention + combine + out_proj.
# Grid = (B,), one batch element per grid step (one per TensorCore on v7x).
# ---------------------------------------------------------------------------
def _splatflow_fused_kernel(x_ref, pos_ref, psq_ref, itv_ref, absimp_ref,
                            enc_wt_ref, enc_b_ref, wcat_ref, decw_ref,
                            dec_bias_ref, gate_wt_ref, gate_b_ref,
                            wqkv_ref, wout_ref, out_ref):
    x = x_ref[0]                                                          # [S, D]
    pos = pos_ref[...]                                                    # [K, D]

    # ------------------------- splat flow path -------------------------
    # squared token<->splat distances via the expansion trick (MXU)
    x_sq = jnp.sum(x * x, axis=-1, keepdims=True)                         # [S, 1]
    cross = jnp.dot(x, pos.T, preferred_element_type=jnp.float32)         # [S, K]
    dist_sq = jnp.maximum(x_sq + psq_ref[...] - 2.0 * cross, 0.0)         # [S, K]
    # itv = 0.5 / clamp(|scale|,1e-6)^2, absimp = |importance| (host-precomputed)
    infl = jnp.exp(-dist_sq * itv_ref[...]) * absimp_ref[...]             # [S, K]

    # gather: weighted average of token embeddings at each splat
    tot = jnp.maximum(jnp.sum(infl, axis=0, keepdims=True), 1e-8)         # [1, K]
    inv_tot = pl.reciprocal(tot, approx=True)                             # EUP
    infl_n = infl * inv_tot                                               # [S, K]
    gathered = jnp.dot(infl_n.T, x, preferred_element_type=jnp.float32)   # [K, D]

    # encoder: Linear(D -> BN) + ReLU
    enc = jnp.maximum(
        jnp.dot(gathered, enc_wt_ref[...], preferred_element_type=jnp.float32)
        + enc_b_ref[...], 0.0)                                            # [K, BN]

    # per-splat transforms as ONE lane-dense matmul:
    #   big[k, k*BN:(k+1)*BN] = enc[k] @ trans_w[k].T ; off-diag blocks masked.
    big = jnp.dot(enc, wcat_ref[...], preferred_element_type=jnp.float32) # [K, K*BN]
    row = lax.broadcasted_iota(jnp.int32, (K, K * BN), 0)
    col = lax.broadcasted_iota(jnp.int32, (K, K * BN), 1)
    blk_mask = (col >= row * BN) & (col < row * BN + BN)
    big = jnp.where(blk_mask, big, 0.0)

    # decoder (tiled) + fused (trans_b @ dec_w.T + dec_b) bias
    dec = jnp.dot(big, decw_ref[...], preferred_element_type=jnp.float32) \
        + dec_bias_ref[...]                                               # [K, D]

    # redistribute back to tokens and gate
    flow = jnp.dot(infl, dec, preferred_element_type=jnp.float32)         # [S, D]
    gate = jax.nn.sigmoid(
        jnp.dot(x, gate_wt_ref[...], preferred_element_type=jnp.float32)
        + gate_b_ref[...])                                                # [S, D]
    splat_out = flow * gate

    # ---------------------- standard attention path ----------------------
    qkv = jnp.dot(x, wqkv_ref[...], preferred_element_type=jnp.float32)   # [S, 3D]
    q = qkv[:, :D]
    k = qkv[:, D:2 * D]
    v = qkv[:, 2 * D:]
    head_outs = []
    for h in range(NH):                                                   # static unroll
        sl = slice(h * HD, (h + 1) * HD)
        q_h, k_h, v_h = q[:, sl], k[:, sl], v[:, sl]
        s = jnp.dot(q_h, k_h.T, preferred_element_type=jnp.float32) * INV_SQRT_HD
        m = jnp.max(s, axis=-1, keepdims=True)
        e = jnp.exp(s - m)
        denom = jnp.sum(e, axis=-1, keepdims=True)
        p = e * pl.reciprocal(denom, approx=True)                         # EUP
        head_outs.append(jnp.dot(p, v_h, preferred_element_type=jnp.float32))
    attn = jnp.concatenate(head_outs, axis=-1)                            # [S, D]

    # ------------------------ combine + out_proj ------------------------
    combined = RATIO * splat_out + STD_RATIO * attn                       # [S, D]
    out_ref[0] = jnp.dot(combined, wout_ref[...],
                         preferred_element_type=jnp.float32)


# ---------------------------------------------------------------------------
# Wrapper
# ---------------------------------------------------------------------------
def splatflow_attention(x, p):
    full = lambda shape: pl.BlockSpec(shape, lambda b: (0,) * len(shape))
    return pl.pallas_call(
        _splatflow_fused_kernel,
        out_shape=jax.ShapeDtypeStruct((B, S, D), jnp.float32),
        grid=(B,),
        in_specs=[
            pl.BlockSpec((1, S, D), lambda b: (b, 0, 0)),   # x
            full((K, D)),                                   # pos
            full((1, K)),                                   # psq
            full((1, K)),                                   # itv
            full((1, K)),                                   # absimp
            full((D, BN)),                                  # enc_wt
            full((1, BN)),                                  # enc_b
            full((BN, K * BN)),                             # wcat (trans blocks)
            full((K * BN, D)),                              # decw tiled
            full((K, D)),                                   # dec_bias (fused)
            full((D, D)),                                   # gate_wt
            full((1, D)),                                   # gate_b
            full((D, 3 * D)),                               # wqkv_t
            full((D, D)),                                   # wout_t
        ],
        out_specs=pl.BlockSpec((1, S, D), lambda b: (b, 0, 0)),
        compiler_params=pltpu.CompilerParams(dimension_semantics=("parallel",)),
    )(x, p["pos"], p["psq"], p["itv"], p["absimp"],
      p["enc_wt"], p["enc_b"], p["wcat"], p["decw_tiled"], p["dec_bias"],
      p["gate_wt"], p["gate_b"], p["wqkv_t"], p["wout_t"])


# ---------------------------------------------------------------------------
# Deterministic parameter construction (shapes per the module __init__)
# ---------------------------------------------------------------------------
def make_params(key):
    keys = jax.random.split(key, 16)

    # splat positions: structured grid init mirroring _init_positions
    gs = int(math.ceil(math.sqrt(K)))
    idx = jnp.arange(K)
    base = jnp.stack([idx // gs, idx % gs], axis=-1).astype(jnp.float32) / gs - 0.5
    rest = 0.1 * jax.random.normal(keys[0], (K, D - 2), jnp.float32)
    pos = jnp.concatenate([base, rest], axis=-1)                     # [K, D]
    scale = jnp.ones((1, K), jnp.float32)                            # splat_scales
    imp = jnp.ones((1, K), jnp.float32)                              # splat_importance

    def lin(k, fan_in, fan_out):
        lim = math.sqrt(6.0 / (fan_in + fan_out))
        return jax.random.uniform(k, (fan_out, fan_in), jnp.float32, -lim, lim)

    enc_w = lin(keys[1], D, BN)
    enc_b = 0.01 * jax.random.normal(keys[2], (1, BN), jnp.float32)
    dec_w = lin(keys[3], BN, D)
    dec_b = 0.01 * jax.random.normal(keys[4], (1, D), jnp.float32)
    trans_w = jax.random.normal(keys[5], (K, BN, BN), jnp.float32) / math.sqrt(BN)
    trans_b = 0.01 * jax.random.normal(keys[6], (K, BN), jnp.float32)
    gate_w = lin(keys[7], D, D)
    gate_b = 0.01 * jax.random.normal(keys[8], (1, D), jnp.float32)
    wq = lin(keys[9], D, D)
    wk = lin(keys[10], D, D)
    wv = lin(keys[11], D, D)
    wout = lin(keys[12], D, D) * 0.5   # module multiplies out_proj weight by 0.5

    # TODO(synk): position_update_net / splat_specialization / usage buffers are
    # training-time only (adapt_positions, health stats); not in eval forward.

    # ---- host-side precompute for the fused kernel ----
    scale_c = jnp.maximum(jnp.abs(scale), 1e-6)
    itv = 0.5 / (scale_c * scale_c)                                  # [1, K]
    absimp = jnp.abs(imp)                                            # [1, K]
    psq = jnp.sum(pos * pos, axis=-1, keepdims=True).T               # [1, K]
    # concat of per-splat transform weights: wcat[:, k*BN:(k+1)*BN] = trans_w[k].T
    wcat = jnp.transpose(trans_w, (2, 0, 1)).reshape(BN, K * BN)     # [BN, K*BN]
    decw_tiled = jnp.tile(dec_w.T, (K, 1))                           # [K*BN, D]
    dec_bias = trans_b @ dec_w.T + dec_b                             # [K, D]
    wqkv_t = jnp.concatenate([wq.T, wk.T, wv.T], axis=1)             # [D, 3D]

    return {
        # kernel-layout (precomputed) tensors
        "pos": pos, "psq": psq, "itv": itv, "absimp": absimp,
        "enc_wt": enc_w.T, "enc_b": enc_b,
        "wcat": wcat, "decw_tiled": decw_tiled, "dec_bias": dec_bias,
        "gate_wt": gate_w.T, "gate_b": gate_b,
        "wqkv_t": wqkv_t, "wout_t": wout.T,
        # PyTorch-layout copies for the pure-JAX reference
        "scale": scale, "imp": imp,
        "enc_w": enc_w, "dec_w": dec_w, "dec_b": dec_b,
        "trans_w": trans_w, "trans_b": trans_b, "gate_w": gate_w,
        "wq": wq, "wk": wk, "wv": wv, "wout": wout,
    }


# ---------------------------------------------------------------------------
# Pure-JAX reference mirroring the PyTorch forward (eval mode)
# ---------------------------------------------------------------------------
def reference(x, p):
    diff = x[:, :, None, :] - p["pos"][None, None, :, :]
    dist = jnp.sqrt(jnp.sum(diff * diff, axis=-1))                    # [B,S,K]
    scale = jnp.maximum(jnp.abs(p["scale"][0]), 1e-6)
    infl = jnp.exp(-0.5 * (dist / scale) ** 2) * jnp.abs(p["imp"][0])
    inflT = jnp.swapaxes(infl, 1, 2)                                  # [B,K,S]
    gathered = inflT @ x
    total = jnp.maximum(jnp.sum(inflT, axis=2, keepdims=True), 1e-8)
    gathered = gathered / total
    enc = jax.nn.relu(gathered @ p["enc_w"].T + p["enc_b"][0])
    trans = jnp.einsum('bkh,koh->bko', enc, p["trans_w"]) + p["trans_b"]
    dec = trans @ p["dec_w"].T + p["dec_b"][0]
    flow = infl @ dec
    gate = jax.nn.sigmoid(x @ p["gate_w"].T + p["gate_b"][0])
    splat_out = flow * gate

    def heads(t):
        return jnp.swapaxes(t.reshape(B, S, NH, HD), 1, 2)

    q, k, v = heads(x @ p["wq"].T), heads(x @ p["wk"].T), heads(x @ p["wv"].T)
    scores = q @ jnp.swapaxes(k, -2, -1) / math.sqrt(HD)
    probs = jax.nn.softmax(scores, axis=-1)
    attn = jnp.swapaxes(probs @ v, 1, 2).reshape(B, S, D)
    combined = RATIO * splat_out + STD_RATIO * attn
    return combined @ p["wout"].T


if __name__ == "__main__":
    key = jax.random.PRNGKey(0)
    pkey, xkey = jax.random.split(key)
    params = make_params(pkey)
    x = 0.1 * jax.random.normal(xkey, (B, S, D), jnp.float32)

    out = jax.jit(splatflow_attention)(x, params)
    out = jax.block_until_ready(out)

    ref = reference(x, params)
    assert out.shape == (B, S, D), out.shape
    # tolerance allows for EUP approximate-reciprocal use inside the kernel
    if not bool(jnp.allclose(out, ref, atol=1e-3, rtol=1e-3)):
        max_err = float(jnp.max(jnp.abs(out - ref)))
        raise AssertionError(f"kernel mismatch vs reference, max_err={max_err}")
    print("KERNEL_OK")
</pallas_src>

<mosaic_0001>
module attributes {stable_mosaic.version = 11 : i64} {
  func.func @_splatflow_fused_kernel(%arg0: i32, %arg1: memref<1x8x32xf32, #tpu.memory_space<vmem>>, %arg2: memref<8x32xf32, #tpu.memory_space<vmem>>, %arg3: memref<1x8xf32, #tpu.memory_space<vmem>>, %arg4: memref<1x8xf32, #tpu.memory_space<vmem>>, %arg5: memref<1x8xf32, #tpu.memory_space<vmem>>, %arg6: memref<32x16xf32, #tpu.memory_space<vmem>>, %arg7: memref<1x16xf32, #tpu.memory_space<vmem>>, %arg8: memref<16x128xf32, #tpu.memory_space<vmem>>, %arg9: memref<128x32xf32, #tpu.memory_space<vmem>>, %arg10: memref<8x32xf32, #tpu.memory_space<vmem>>, %arg11: memref<32x32xf32, #tpu.memory_space<vmem>>, %arg12: memref<1x32xf32, #tpu.memory_space<vmem>>, %arg13: memref<32x96xf32, #tpu.memory_space<vmem>>, %arg14: memref<32x32xf32, #tpu.memory_space<vmem>>, %arg15: memref<1x8x32xf32, #tpu.memory_space<vmem>>) attributes {dimension_semantics = [#tpu.dimension_semantics<parallel>], iteration_bounds = array<i64: 2>, scalar_prefetch = 0 : i64, scratch_operands = 0 : i64, tpu.core_type = #tpu.core_type<tc>, window_params = [{transform_indices = @transform_0, window_bounds = array<i64: 1, 8, 32>}, {pipeline_mode = #tpu.pipeline_mode<synchronous>, transform_indices = @transform_1, window_bounds = array<i64: 8, 32>}, {pipeline_mode = #tpu.pipeline_mode<synchronous>, transform_indices = @transform_2, window_bounds = array<i64: 1, 8>}, {pipeline_mode = #tpu.pipeline_mode<synchronous>, transform_indices = @transform_3, window_bounds = array<i64: 1, 8>}, {pipeline_mode = #tpu.pipeline_mode<synchronous>, transform_indices = @transform_4, window_bounds = array<i64: 1, 8>}, {pipeline_mode = #tpu.pipeline_mode<synchronous>, transform_indices = @transform_5, window_bounds = array<i64: 32, 16>}, {pipeline_mode = #tpu.pipeline_mode<synchronous>, transform_indices = @transform_6, window_bounds = array<i64: 1, 16>}, {pipeline_mode = #tpu.pipeline_mode<synchronous>, transform_indices = @transform_7, window_bounds = array<i64: 16, 128>}, {pipeline_mode = #tpu.pipeline_mode<synchronous>, transform_indices = @transform_8, window_bounds = array<i64: 128, 32>}, {pipeline_mode = #tpu.pipeline_mode<synchronous>, transform_indices = @transform_9, window_bounds = array<i64: 8, 32>}, {pipeline_mode = #tpu.pipeline_mode<synchronous>, transform_indices = @transform_10, window_bounds = array<i64: 32, 32>}, {pipeline_mode = #tpu.pipeline_mode<synchronous>, transform_indices = @transform_11, window_bounds = array<i64: 1, 32>}, {pipeline_mode = #tpu.pipeline_mode<synchronous>, transform_indices = @transform_12, window_bounds = array<i64: 32, 96>}, {pipeline_mode = #tpu.pipeline_mode<synchronous>, transform_indices = @transform_13, window_bounds = array<i64: 32, 32>}, {transform_indices = @transform_14, window_bounds = array<i64: 1, 8, 32>}]} {
    %c0 = arith.constant 0 : index
    %c0_0 = arith.constant 0 : index
    %c0_1 = arith.constant 0 : index
    %0 = vector.load %arg1[%c0, %c0_0, %c0_1] : memref<1x8x32xf32, #tpu.memory_space<vmem>>, vector<1x8x32xf32>
    %1 = vector.shape_cast %0 : vector<1x8x32xf32> to vector<8x32xf32>
    %c0_2 = arith.constant 0 : index
    %c0_3 = arith.constant 0 : index
    %2 = vector.load %arg2[%c0_2, %c0_3] : memref<8x32xf32, #tpu.memory_space<vmem>>, vector<8x32xf32>
    %3 = arith.mulf %1, %1 : vector<8x32xf32>
    %cst = arith.constant dense<0.000000e+00> : vector<8xf32>
    %4 = vector.multi_reduction <add>, %3, %cst [1] : vector<8x32xf32> to vector<8xf32>
    %5 = vector.shape_cast %4 : vector<8xf32> to vector<8x1xf32>
    %6 = tpu.transpose %2, [1, 0] : vector<8x32xf32> -> vector<32x8xf32>
    %cst_4 = arith.constant dense<0.000000e+00> : vector<8x8xf32>
    %7 = tpu.matmul %1, %6, %cst_4 {dimension_numbers = #tpu.dot_dimension_numbers<[1], [0], [0], [1], [0, 0, 1, 1], [], []>} : vector<8x32xf32>, vector<32x8xf32>, vector<8x8xf32> -> vector<8x8xf32>
    %c0_5 = arith.constant 0 : index
    %c0_6 = arith.constant 0 : index
    %8 = vector.load %arg3[%c0_5, %c0_6] : memref<1x8xf32, #tpu.memory_space<vmem>>, vector<1x8xf32>
    %9 = vector.broadcast %5 : vector<8x1xf32> to vector<8x8xf32>
    %10 = vector.broadcast %8 : vector<1x8xf32> to vector<8x8xf32>
    %11 = arith.addf %9, %10 : vector<8x8xf32>
    %cst_7 = arith.constant 2.000000e+00 : f32
    %12 = vector.broadcast %cst_7 : f32 to vector<8x8xf32>
    %13 = arith.mulf %12, %7 : vector<8x8xf32>
    %14 = arith.subf %11, %13 : vector<8x8xf32>
    %cst_8 = arith.constant 0.000000e+00 : f32
    %15 = vector.broadcast %cst_8 : f32 to vector<8x8xf32>
    %16 = arith.maximumf %14, %15 : vector<8x8xf32>
    %cst_9 = arith.constant 0.000000e+00 : f32
    %17 = vector.broadcast %cst_9 : f32 to vector<8x8xf32>
    %18 = arith.subf %17, %16 : vector<8x8xf32>
    %c0_10 = arith.constant 0 : index
    %c0_11 = arith.constant 0 : index
    %19 = vector.load %arg4[%c0_10, %c0_11] : memref<1x8xf32, #tpu.memory_space<vmem>>, vector<1x8xf32>
    %20 = vector.broadcast %19 : vector<1x8xf32> to vector<8x8xf32>
    %21 = arith.mulf %18, %20 : vector<8x8xf32>
    %22 = math.exp %21 : vector<8x8xf32>
    %c0_12 = arith.constant 0 : index
    %c0_13 = arith.constant 0 : index
    %23 = vector.load %arg5[%c0_12, %c0_13] : memref<1x8xf32, #tpu.memory_space<vmem>>, vector<1x8xf32>
    %24 = vector.broadcast %23 : vector<1x8xf32> to vector<8x8xf32>
    %25 = arith.mulf %22, %24 : vector<8x8xf32>
    %cst_14 = arith.constant dense<0.000000e+00> : vector<8xf32>
    %26 = vector.multi_reduction <add>, %25, %cst_14 [0] : vector<8x8xf32> to vector<8xf32>
    %27 = vector.shape_cast %26 : vector<8xf32> to vector<1x8xf32>
    %cst_15 = arith.constant 9.99999993E-9 : f32
    %28 = vector.broadcast %cst_15 : f32 to vector<1x8xf32>
    %29 = arith.maximumf %27, %28 : vector<1x8xf32>
    %30 = tpu.reciprocal %29 {approx = true} : vector<1x8xf32> -> vector<1x8xf32>
    %31 = vector.broadcast %30 : vector<1x8xf32> to vector<8x8xf32>
    %32 = arith.mulf %25, %31 : vector<8x8xf32>
    %33 = tpu.transpose %32, [1, 0] : vector<8x8xf32> -> vector<8x8xf32>
    %cst_16 = arith.constant dense<0.000000e+00> : vector<8x32xf32>
    %34 = tpu.matmul %33, %1, %cst_16 {dimension_numbers = #tpu.dot_dimension_numbers<[1], [0], [0], [1], [0, 0, 1, 1], [], []>} : vector<8x8xf32>, vector<8x32xf32>, vector<8x32xf32> -> vector<8x32xf32>
    %c0_17 = arith.constant 0 : index
    %c0_18 = arith.constant 0 : index
    %35 = vector.load %arg6[%c0_17, %c0_18] : memref<32x16xf32, #tpu.memory_space<vmem>>, vector<32x16xf32>
    %cst_19 = arith.constant dense<0.000000e+00> : vector<8x16xf32>
    %36 = tpu.matmul %34, %35, %cst_19 {dimension_numbers = #tpu.dot_dimension_numbers<[1], [0], [0], [1], [0, 0, 1, 1], [], []>} : vector<8x32xf32>, vector<32x16xf32>, vector<8x16xf32> -> vector<8x16xf32>
    %c0_20 = arith.constant 0 : index
    %c0_21 = arith.constant 0 : index
    %37 = vector.load %arg7[%c0_20, %c0_21] : memref<1x16xf32, #tpu.memory_space<vmem>>, vector<1x16xf32>
    %38 = vector.broadcast %37 : vector<1x16xf32> to vector<8x16xf32>
    %39 = arith.addf %36, %38 : vector<8x16xf32>
    %cst_22 = arith.constant 0.000000e+00 : f32
    %40 = vector.broadcast %cst_22 : f32 to vector<8x16xf32>
    %41 = arith.maximumf %39, %40 : vector<8x16xf32>
    %c0_23 = arith.constant 0 : index
    %c0_24 = arith.constant 0 : index
    %42 = vector.load %arg8[%c0_23, %c0_24] : memref<16x128xf32, #tpu.memory_space<vmem>>, vector<16x128xf32>
    %cst_25 = arith.constant dense<0.000000e+00> : vector<8x128xf32>
    %43 = tpu.matmul %41, %42, %cst_25 {dimension_numbers = #tpu.dot_dimension_numbers<[1], [0], [0], [1], [0, 0, 1, 1], [], []>} : vector<8x16xf32>, vector<16x128xf32>, vector<8x128xf32> -> vector<8x128xf32>
    %44 = tpu.iota {dimensions = array<i32: 0>} : vector<8x128xi32>
    %45 = tpu.iota {dimensions = array<i32: 1>} : vector<8x128xi32>
    %c16_i32 = arith.constant 16 : i32
    %46 = vector.broadcast %c16_i32 : i32 to vector<8x128xi32>
    %47 = arith.muli %44, %46 : vector<8x128xi32>
    %48 = arith.cmpi sge, %45, %47 : vector<8x128xi32>
    %c16_i32_26 = arith.constant 16 : i32
    %49 = vector.broadcast %c16_i32_26 : i32 to vector<8x128xi32>
    %50 = arith.muli %44, %49 : vector<8x128xi32>
    %c16_i32_27 = arith.constant 16 : i32
    %51 = vector.broadcast %c16_i32_27 : i32 to vector<8x128xi32>
    %52 = arith.addi %50, %51 : vector<8x128xi32>
    %53 = arith.cmpi slt, %45, %52 : vector<8x128xi32>
    %54 = arith.andi %48, %53 : vector<8x128xi1>
    %cst_28 = arith.constant 0.000000e+00 : f32
    %55 = vector.broadcast %cst_28 : f32 to vector<8x128xf32>
    %56 = arith.select %54, %43, %55 : vector<8x128xi1>, vector<8x128xf32>
    %c0_29 = arith.constant 0 : index
    %c0_30 = arith.constant 0 : index
    %57 = vector.load %arg9[%c0_29, %c0_30] : memref<128x32xf32, #tpu.memory_space<vmem>>, vector<128x32xf32>
    %cst_31 = arith.constant dense<0.000000e+00> : vector<8x32xf32>
    %58 = tpu.matmul %56, %57, %cst_31 {dimension_numbers = #tpu.dot_dimension_numbers<[1], [0], [0], [1], [0, 0, 1, 1], [], []>} : vector<8x128xf32>, vector<128x32xf32>, vector<8x32xf32> -> vector<8x32xf32>
    %c0_32 = arith.constant 0 : index
    %c0_33 = arith.constant 0 : index
    %59 = vector.load %arg10[%c0_32, %c0_33] : memref<8x32xf32, #tpu.memory_space<vmem>>, vector<8x32xf32>
    %60 = arith.addf %58, %59 : vector<8x32xf32>
    %cst_34 = arith.constant dense<0.000000e+00> : vector<8x32xf32>
    %61 = tpu.matmul %25, %60, %cst_34 {dimension_numbers = #tpu.dot_dimension_numbers<[1], [0], [0], [1], [0, 0, 1, 1], [], []>} : vector<8x8xf32>, vector<8x32xf32>, vector<8x32xf32> -> vector<8x32xf32>
    %c0_35 = arith.constant 0 : index
    %c0_36 = arith.constant 0 : index
    %62 = vector.load %arg11[%c0_35, %c0_36] : memref<32x32xf32, #tpu.memory_space<vmem>>, vector<32x32xf32>
    %cst_37 = arith.constant dense<0.000000e+00> : vector<8x32xf32>
    %63 = tpu.matmul %1, %62, %cst_37 {dimension_numbers = #tpu.dot_dimension_numbers<[1], [0], [0], [1], [0, 0, 1, 1], [], []>} : vector<8x32xf32>, vector<32x32xf32>, vector<8x32xf32> -> vector<8x32xf32>
    %c0_38 = arith.constant 0 : index
    %c0_39 = arith.constant 0 : index
    %64 = vector.load %arg12[%c0_38, %c0_39] : memref<1x32xf32, #tpu.memory_space<vmem>>, vector<1x32xf32>
    %65 = vector.broadcast %64 : vector<1x32xf32> to vector<8x32xf32>
    %66 = arith.addf %63, %65 : vector<8x32xf32>
    %67 = arith.negf %66 : vector<8x32xf32>
    %68 = math.exp %67 : vector<8x32xf32>
    %cst_40 = arith.constant 1.000000e+00 : f32
    %69 = vector.broadcast %cst_40 : f32 to vector<8x32xf32>
    %70 = arith.addf %69, %68 : vector<8x32xf32>
    %71 = arith.divf %69, %70 : vector<8x32xf32>
    %72 = arith.mulf %61, %71 : vector<8x32xf32>
    %c0_41 = arith.constant 0 : index
    %c0_42 = arith.constant 0 : index
    %73 = vector.load %arg13[%c0_41, %c0_42] : memref<32x96xf32, #tpu.memory_space<vmem>>, vector<32x96xf32>
    %cst_43 = arith.constant dense<0.000000e+00> : vector<8x96xf32>
    %74 = tpu.matmul %1, %73, %cst_43 {dimension_numbers = #tpu.dot_dimension_numbers<[1], [0], [0], [1], [0, 0, 1, 1], [], []>} : vector<8x32xf32>, vector<32x96xf32>, vector<8x96xf32> -> vector<8x96xf32>
    %75 = vector.extract_strided_slice %74 {offsets = [0, 0], sizes = [8, 32], strides = [1, 1]} : vector<8x96xf32> to vector<8x32xf32>
    %76 = vector.extract_strided_slice %74 {offsets = [0, 32], sizes = [8, 32], strides = [1, 1]} : vector<8x96xf32> to vector<8x32xf32>
    %77 = vector.extract_strided_slice %74 {offsets = [0, 64], sizes = [8, 32], strides = [1, 1]} : vector<8x96xf32> to vector<8x32xf32>
    %78 = vector.extract_strided_slice %75 {offsets = [0, 0], sizes = [8, 8], strides = [1, 1]} : vector<8x32xf32> to vector<8x8xf32>
    %79 = vector.extract_strided_slice %76 {offsets = [0, 0], sizes = [8, 8], strides = [1, 1]} : vector<8x32xf32> to vector<8x8xf32>
    %80 = vector.extract_strided_slice %77 {offsets = [0, 0], sizes = [8, 8], strides = [1, 1]} : vector<8x32xf32> to vector<8x8xf32>
    %81 = tpu.transpose %79, [1, 0] : vector<8x8xf32> -> vector<8x8xf32>
    %cst_44 = arith.constant dense<0.000000e+00> : vector<8x8xf32>
    %82 = tpu.matmul %78, %81, %cst_44 {dimension_numbers = #tpu.dot_dimension_numbers<[1], [0], [0], [1], [0, 0, 1, 1], [], []>} : vector<8x8xf32>, vector<8x8xf32>, vector<8x8xf32> -> vector<8x8xf32>
    %cst_45 = arith.constant 0.353553385 : f32
    %83 = vector.broadcast %cst_45 : f32 to vector<8x8xf32>
    %84 = arith.mulf %82, %83 : vector<8x8xf32>
    %cst_46 = arith.constant dense<0xFF800000> : vector<8xf32>
    %85 = vector.multi_reduction <maximumf>, %84, %cst_46 [1] : vector<8x8xf32> to vector<8xf32>
    %86 = vector.shape_cast %85 : vector<8xf32> to vector<8x1xf32>
    %87 = vector.broadcast %86 : vector<8x1xf32> to vector<8x8xf32>
    %88 = arith.subf %84, %87 : vector<8x8xf32>
    %89 = math.exp %88 : vector<8x8xf32>
    %cst_47 = arith.constant dense<0.000000e+00> : vector<8xf32>
    %90 = vector.multi_reduction <add>, %89, %cst_47 [1] : vector<8x8xf32> to vector<8xf32>
    %91 = vector.shape_cast %90 : vector<8xf32> to vector<8x1xf32>
    %92 = tpu.reciprocal %91 {approx = true} : vector<8x1xf32> -> vector<8x1xf32>
    %93 = vector.broadcast %92 : vector<8x1xf32> to vector<8x8xf32>
    %94 = arith.mulf %89, %93 : vector<8x8xf32>
    %cst_48 = arith.constant dense<0.000000e+00> : vector<8x8xf32>
    %95 = tpu.matmul %94, %80, %cst_48 {dimension_numbers = #tpu.dot_dimension_numbers<[1], [0], [0], [1], [0, 0, 1, 1], [], []>} : vector<8x8xf32>, vector<8x8xf32>, vector<8x8xf32> -> vector<8x8xf32>
    %96 = vector.extract_strided_slice %75 {offsets = [0, 8], sizes = [8, 8], strides = [1, 1]} : vector<8x32xf32> to vector<8x8xf32>
    %97 = vector.extract_strided_slice %76 {offsets = [0, 8], sizes = [8, 8], strides = [1, 1]} : vector<8x32xf32> to vector<8x8xf32>
    %98 = vector.extract_strided_slice %77 {offsets = [0, 8], sizes = [8, 8], strides = [1, 1]} : vector<8x32xf32> to vector<8x8xf32>
    %99 = tpu.transpose %97, [1, 0] : vector<8x8xf32> -> vector<8x8xf32>
    %cst_49 = arith.constant dense<0.000000e+00> : vector<8x8xf32>
    %100 = tpu.matmul %96, %99, %cst_49 {dimension_numbers = #tpu.dot_dimension_numbers<[1], [0], [0], [1], [0, 0, 1, 1], [], []>} : vector<8x8xf32>, vector<8x8xf32>, vector<8x8xf32> -> vector<8x8xf32>
    %cst_50 = arith.constant 0.353553385 : f32
    %101 = vector.broadcast %cst_50 : f32 to vector<8x8xf32>
    %102 = arith.mulf %100, %101 : vector<8x8xf32>
    %cst_51 = arith.constant dense<0xFF800000> : vector<8xf32>
    %103 = vector.multi_reduction <maximumf>, %102, %cst_51 [1] : vector<8x8xf32> to vector<8xf32>
    %104 = vector.shape_cast %103 : vector<8xf32> to vector<8x1xf32>
    %105 = vector.broadcast %104 : vector<8x1xf32> to vector<8x8xf32>
    %106 = arith.subf %102, %105 : vector<8x8xf32>
    %107 = math.exp %106 : vector<8x8xf32>
    %cst_52 = arith.constant dense<0.000000e+00> : vector<8xf32>
    %108 = vector.multi_reduction <add>, %107, %cst_52 [1] : vector<8x8xf32> to vector<8xf32>
    %109 = vector.shape_cast %108 : vector<8xf32> to vector<8x1xf32>
    %110 = tpu.reciprocal %109 {approx = true} : vector<8x1xf32> -> vector<8x1xf32>
    %111 = vector.broadcast %110 : vector<8x1xf32> to vector<8x8xf32>
    %112 = arith.mulf %107, %111 : vector<8x8xf32>
    %cst_53 = arith.constant dense<0.000000e+00> : vector<8x8xf32>
    %113 = tpu.matmul %112, %98, %cst_53 {dimension_numbers = #tpu.dot_dimension_numbers<[1], [0], [0], [1], [0, 0, 1, 1], [], []>} : vector<8x8xf32>, vector<8x8xf32>, vector<8x8xf32> -> vector<8x8xf32>
    %114 = vector.extract_strided_slice %75 {offsets = [0, 16], sizes = [8, 8], strides = [1, 1]} : vector<8x32xf32> to vector<8x8xf32>
    %115 = vector.extract_strided_slice %76 {offsets = [0, 16], sizes = [8, 8], strides = [1, 1]} : vector<8x32xf32> to vector<8x8xf32>
    %116 = vector.extract_strided_slice %77 {offsets = [0, 16], sizes = [8, 8], strides = [1, 1]} : vector<8x32xf32> to vector<8x8xf32>
    %117 = tpu.transpose %115, [1, 0] : vector<8x8xf32> -> vector<8x8xf32>
    %cst_54 = arith.constant dense<0.000000e+00> : vector<8x8xf32>
    %118 = tpu.matmul %114, %117, %cst_54 {dimension_numbers = #tpu.dot_dimension_numbers<[1], [0], [0], [1], [0, 0, 1, 1], [], []>} : vector<8x8xf32>, vector<8x8xf32>, vector<8x8xf32> -> vector<8x8xf32>
    %cst_55 = arith.constant 0.353553385 : f32
    %119 = vector.broadcast %cst_55 : f32 to vector<8x8xf32>
    %120 = arith.mulf %118, %119 : vector<8x8xf32>
    %cst_56 = arith.constant dense<0xFF800000> : vector<8xf32>
    %121 = vector.multi_reduction <maximumf>, %120, %cst_56 [1] : vector<8x8xf32> to vector<8xf32>
    %122 = vector.shape_cast %121 : vector<8xf32> to vector<8x1xf32>
    %123 = vector.broadcast %122 : vector<8x1xf32> to vector<8x8xf32>
    %124 = arith.subf %120, %123 : vector<8x8xf32>
    %125 = math.exp %124 : vector<8x8xf32>
    %cst_57 = arith.constant dense<0.000000e+00> : vector<8xf32>
    %126 = vector.multi_reduction <add>, %125, %cst_57 [1] : vector<8x8xf32> to vector<8xf32>
    %127 = vector.shape_cast %126 : vector<8xf32> to vector<8x1xf32>
    %128 = tpu.reciprocal %127 {approx = true} : vector<8x1xf32> -> vector<8x1xf32>
    %129 = vector.broadcast %128 : vector<8x1xf32> to vector<8x8xf32>
    %130 = arith.mulf %125, %129 : vector<8x8xf32>
    %cst_58 = arith.constant dense<0.000000e+00> : vector<8x8xf32>
    %131 = tpu.matmul %130, %116, %cst_58 {dimension_numbers = #tpu.dot_dimension_numbers<[1], [0], [0], [1], [0, 0, 1, 1], [], []>} : vector<8x8xf32>, vector<8x8xf32>, vector<8x8xf32> -> vector<8x8xf32>
    %132 = vector.extract_strided_slice %75 {offsets = [0, 24], sizes = [8, 8], strides = [1, 1]} : vector<8x32xf32> to vector<8x8xf32>
    %133 = vector.extract_strided_slice %76 {offsets = [0, 24], sizes = [8, 8], strides = [1, 1]} : vector<8x32xf32> to vector<8x8xf32>
    %134 = vector.extract_strided_slice %77 {offsets = [0, 24], sizes = [8, 8], strides = [1, 1]} : vector<8x32xf32> to vector<8x8xf32>
    %135 = tpu.transpose %133, [1, 0] : vector<8x8xf32> -> vector<8x8xf32>
    %cst_59 = arith.constant dense<0.000000e+00> : vector<8x8xf32>
    %136 = tpu.matmul %132, %135, %cst_59 {dimension_numbers = #tpu.dot_dimension_numbers<[1], [0], [0], [1], [0, 0, 1, 1], [], []>} : vector<8x8xf32>, vector<8x8xf32>, vector<8x8xf32> -> vector<8x8xf32>
    %cst_60 = arith.constant 0.353553385 : f32
    %137 = vector.broadcast %cst_60 : f32 to vector<8x8xf32>
    %138 = arith.mulf %136, %137 : vector<8x8xf32>
    %cst_61 = arith.constant dense<0xFF800000> : vector<8xf32>
    %139 = vector.multi_reduction <maximumf>, %138, %cst_61 [1] : vector<8x8xf32> to vector<8xf32>
    %140 = vector.shape_cast %139 : vector<8xf32> to vector<8x1xf32>
    %141 = vector.broadcast %140 : vector<8x1xf32> to vector<8x8xf32>
    %142 = arith.subf %138, %141 : vector<8x8xf32>
    %143 = math.exp %142 : vector<8x8xf32>
    %cst_62 = arith.constant dense<0.000000e+00> : vector<8xf32>
    %144 = vector.multi_reduction <add>, %143, %cst_62 [1] : vector<8x8xf32> to vector<8xf32>
    %145 = vector.shape_cast %144 : vector<8xf32> to vector<8x1xf32>
    %146 = tpu.reciprocal %145 {approx = true} : vector<8x1xf32> -> vector<8x1xf32>
    %147 = vector.broadcast %146 : vector<8x1xf32> to vector<8x8xf32>
    %148 = arith.mulf %143, %147 : vector<8x8xf32>
    %cst_63 = arith.constant dense<0.000000e+00> : vector<8x8xf32>
    %149 = tpu.matmul %148, %134, %cst_63 {dimension_numbers = #tpu.dot_dimension_numbers<[1], [0], [0], [1], [0, 0, 1, 1], [], []>} : vector<8x8xf32>, vector<8x8xf32>, vector<8x8xf32> -> vector<8x8xf32>
    %150 = tpu.concatenate %95, %113, %131, %149 in 1 : vector<8x8xf32>, vector<8x8xf32>, vector<8x8xf32>, vector<8x8xf32> -> vector<8x32xf32>
    %cst_64 = arith.constant 4.000000e-01 : f32
    %151 = vector.broadcast %cst_64 : f32 to vector<8x32xf32>
    %152 = arith.mulf %151, %72 : vector<8x32xf32>
    %cst_65 = arith.constant 6.000000e-01 : f32
    %153 = vector.broadcast %cst_65 : f32 to vector<8x32xf32>
    %154 = arith.mulf %153, %150 : vector<8x32xf32>
    %155 = arith.addf %152, %154 : vector<8x32xf32>
    %c0_66 = arith.constant 0 : index
    %c0_67 = arith.constant 0 : index
    %156 = vector.load %arg14[%c0_66, %c0_67] : memref<32x32xf32, #tpu.memory_space<vmem>>, vector<32x32xf32>
    %cst_68 = arith.constant dense<0.000000e+00> : vector<8x32xf32>
    %157 = tpu.matmul %155, %156, %cst_68 {dimension_numbers = #tpu.dot_dimension_numbers<[1], [0], [0], [1], [0, 0, 1, 1], [], []>} : vector<8x32xf32>, vector<32x32xf32>, vector<8x32xf32> -> vector<8x32xf32>
    %c0_69 = arith.constant 0 : index
    %c0_70 = arith.constant 0 : index
    %c0_71 = arith.constant 0 : index
    %158 = vector.load %arg15[%c0_69, %c0_70, %c0_71] : memref<1x8x32xf32, #tpu.memory_space<vmem>>, vector<1x8x32xf32>
    %159 = vector.shape_cast %158 : vector<1x8x32xf32> to vector<8x32xf32>
    %160 = vector.shape_cast %157 : vector<8x32xf32> to vector<1x8x32xf32>
    tpu.vector_store %arg15[%c0_69, %c0_70, %c0_71], %160 {strides = array<i32>} : memref<1x8x32xf32, #tpu.memory_space<vmem>>, vector<1x8x32xf32>,
    return
  }
  func.func @transform_0(%arg0: i32) -> (i32, i32, i32) {
    %c0_i32 = arith.constant 0 : i32
    %c0_i32_0 = arith.constant 0 : i32
    %c0_i32_1 = arith.constant 0 : i32
    return %arg0, %c0_i32, %c0_i32_0 : i32, i32, i32
  }
  func.func @transform_1(%arg0: i32) -> (i32, i32) {
    %c0_i32 = arith.constant 0 : i32
    %c0_i32_0 = arith.constant 0 : i32
    %c0_i32_1 = arith.constant 0 : i32
    return %c0_i32, %c0_i32_0 : i32, i32
  }
  func.func @transform_2(%arg0: i32) -> (i32, i32) {
    %c0_i32 = arith.constant 0 : i32
    %c0_i32_0 = arith.constant 0 : i32
    %c0_i32_1 = arith.constant 0 : i32
    return %c0_i32, %c0_i32_0 : i32, i32
  }
  func.func @transform_3(%arg0: i32) -> (i32, i32) {
    %c0_i32 = arith.constant 0 : i32
    %c0_i32_0 = arith.constant 0 : i32
    %c0_i32_1 = arith.constant 0 : i32
    return %c0_i32, %c0_i32_0 : i32, i32
  }
  func.func @transform_4(%arg0: i32) -> (i32, i32) {
    %c0_i32 = arith.constant 0 : i32
    %c0_i32_0 = arith.constant 0 : i32
    %c0_i32_1 = arith.constant 0 : i32
    return %c0_i32, %c0_i32_0 : i32, i32
  }
  func.func @transform_5(%arg0: i32) -> (i32, i32) {
    %c0_i32 = arith.constant 0 : i32
    %c0_i32_0 = arith.constant 0 : i32
    %c0_i32_1 = arith.constant 0 : i32
    return %c0_i32, %c0_i32_0 : i32, i32
  }
  func.func @transform_6(%arg0: i32) -> (i32, i32) {
    %c0_i32 = arith.constant 0 : i32
    %c0_i32_0 = arith.constant 0 : i32
    %c0_i32_1 = arith.constant 0 : i32
    return %c0_i32, %c0_i32_0 : i32, i32
  }
  func.func @transform_7(%arg0: i32) -> (i32, i32) {
    %c0_i32 = arith.constant 0 : i32
    %c0_i32_0 = arith.constant 0 : i32
    %c0_i32_1 = arith.constant 0 : i32
    return %c0_i32, %c0_i32_0 : i32, i32
  }
  func.func @transform_8(%arg0: i32) -> (i32, i32) {
    %c0_i32 = arith.constant 0 : i32
    %c0_i32_0 = arith.constant 0 : i32
    %c0_i32_1 = arith.constant 0 : i32
    return %c0_i32, %c0_i32_0 : i32, i32
  }
  func.func @transform_9(%arg0: i32) -> (i32, i32) {
    %c0_i32 = arith.constant 0 : i32
    %c0_i32_0 = arith.constant 0 : i32
    %c0_i32_1 = arith.constant 0 : i32
    return %c0_i32, %c0_i32_0 : i32, i32
  }
  func.func @transform_10(%arg0: i32) -> (i32, i32) {
    %c0_i32 = arith.constant 0 : i32
    %c0_i32_0 = arith.constant 0 : i32
    %c0_i32_1 = arith.constant 0 : i32
    return %c0_i32, %c0_i32_0 : i32, i32
  }
  func.func @transform_11(%arg0: i32) -> (i32, i32) {
    %c0_i32 = arith.constant 0 : i32
    %c0_i32_0 = arith.constant 0 : i32
    %c0_i32_1 = arith.constant 0 : i32
    return %c0_i32, %c0_i32_0 : i32, i32
  }
  func.func @transform_12(%arg0: i32) -> (i32, i32) {
    %c0_i32 = arith.constant 0 : i32
    %c0_i32_0 = arith.constant 0 : i32
    %c0_i32_1 = arith.constant 0 : i32
    return %c0_i32, %c0_i32_0 : i32, i32
  }
  func.func @transform_13(%arg0: i32) -> (i32, i32) {
    %c0_i32 = arith.constant 0 : i32
    %c0_i32_0 = arith.constant 0 : i32
    %c0_i32_1 = arith.constant 0 : i32
    return %c0_i32, %c0_i32_0 : i32, i32
  }
  func.func @transform_14(%arg0: i32) -> (i32, i32, i32) {
    %c0_i32 = arith.constant 0 : i32
    %c0_i32_0 = arith.constant 0 : i32
    %c0_i32_1 = arith.constant 0 : i32
    return %arg0, %c0_i32, %c0_i32_0 : i32, i32, i32
  }
}

</mosaic_0001>

<llo_original>
// kernel: splatflow_attention.1
$region0: #{splatflow_attention.1}
  #allocation0 [shape = 'u32[]', space=smem, size = 0x4, offset = 0x4, fixed_abs, tag = 'smem constant byte address 0x4 - core index']
  #allocation1 [shape = 'u32[144,128]{1,0:T(1,128)}', space=vmem, size = 0x12000, scoped, tag = 'internal scratch']
  %s0 = inlined_call_operand.vmem [shape: f32[2,8,32], index: 0, kind: input, shape index: {}]
  %s1 = inlined_call_operand.vmem [shape: f32[8,32], index: 1, kind: input, shape index: {}]
  %s2 = inlined_call_operand.vmem [shape: f32[1,8], index: 2, kind: input, shape index: {}]
  %s3 = inlined_call_operand.vmem [shape: f32[1,8], index: 3, kind: input, shape index: {}]
  %s4 = inlined_call_operand.vmem [shape: f32[1,8], index: 4, kind: input, shape index: {}]
  %s5 = inlined_call_operand.vmem [shape: f32[32,16], index: 5, kind: input, shape index: {}]
  %s6 = inlined_call_operand.vmem [shape: f32[1,16], index: 6, kind: input, shape index: {}]
  %s7 = inlined_call_operand.vmem [shape: f32[16,128], index: 7, kind: input, shape index: {}]
  %s8 = inlined_call_operand.vmem [shape: f32[128,32], index: 8, kind: input, shape index: {}]
  %s9 = inlined_call_operand.vmem [shape: f32[8,32], index: 9, kind: input, shape index: {}]
  %s10 = inlined_call_operand.vmem [shape: f32[32,32], index: 10, kind: input, shape index: {}]
  %s11 = inlined_call_operand.vmem [shape: f32[1,32], index: 11, kind: input, shape index: {}]
  %s12 = inlined_call_operand.vmem [shape: f32[32,96], index: 12, kind: input, shape index: {}]
  %s13 = inlined_call_operand.vmem [shape: f32[32,32], index: 13, kind: input, shape index: {}]
  %s14 = inlined_call_operand.hbm [shape: f32[2,8,32], index: 14, kind: output, shape index: {}]
  %s15 = sld [smem:[#allocation0]]
  $region89: #{splatflow_attention.1} parent=0
    _
  %s17 = ssub.s32 1, %s15
  %s18 = scalar_select 0, %s17, %s15
  $region1: #{splatflow_attention.1} parent=0
    #allocation2 [shape = 'u8[8192]{0}', space=vmem, size = 0x2000, scoped, tag = 'output window, operand 0']
    #allocation3 [shape = 's32[2]{0}', space=sflag, size = 0x8, scoped, tag = 'scoped memory for splatflow_attention.1']
    %19 = vsyncpa [#allocation3], 0
    %s20 = scalar_lea.sflag [#allocation3], 1
    %21 = vsyncpa %s20, 0
    loop: start=0, step=1, limit=4
    $region2: #{splatflow_attention.1} parent=1 // loop_pre_header
      _
    $region3: #{splatflow_attention.1} parent=1 // loop_header
      %s23 = sphi 0, %s27
      %p24 = scmp.ge.s32.totalorder %s23, 4
      %s33 = sphi 0, %s35
      %s36 = sphi 0, %s33
      %s37 = sphi 0, %s36
      %s53 = sphi 0, %s37
      %s57 = sphi 0, %s57
      %s59 = sphi 0, %s57
      %s60 = sphi 0, %s59
      %s74 = sphi 0, %s60
      %s78 = sphi 0, %s78
      %s80 = sphi 0, %s78
      %s81 = sphi 0, %s80
      %s95 = sphi 0, %s81
      %s99 = sphi 0, %s99
      %s101 = sphi 0, %s99
      %s102 = sphi 0, %s101
      %s116 = sphi 0, %s102
      %s120 = sphi 0, %s120
      %s122 = sphi 0, %s120
      %s123 = sphi 0, %s122
      %s137 = sphi 0, %s123
      %s141 = sphi 0, %s141
      %s143 = sphi 0, %s141
      %s144 = sphi 0, %s143
      %s158 = sphi 0, %s144
      %s162 = sphi 0, %s162
      %s164 = sphi 0, %s162
      %s165 = sphi 0, %s164
      %s179 = sphi 0, %s165
      %s183 = sphi 0, %s183
      %s185 = sphi 0, %s183
      %s186 = sphi 0, %s185
      %s200 = sphi 0, %s186
      %s204 = sphi 0, %s204
      %s206 = sphi 0, %s204
      %s207 = sphi 0, %s206
      %s221 = sphi 0, %s207
      %s225 = sphi 0, %s225
      %s227 = sphi 0, %s225
      %s228 = sphi 0, %s227
      %s242 = sphi 0, %s228
      %s246 = sphi 0, %s246
      %s248 = sphi 0, %s246
      %s249 = sphi 0, %s248
      %s263 = sphi 0, %s249
      %s267 = sphi 0, %s267
      %s269 = sphi 0, %s267
      %s270 = sphi 0, %s269
      %s284 = sphi 0, %s270
      %s288 = sphi 0, %s288
      %s290 = sphi 0, %s288
      %s291 = sphi 0, %s290
      %s305 = sphi 0, %s291
      %s309 = sphi 0, %s309
      %s311 = sphi 0, %s309
      %s312 = sphi 0, %s311
      %s326 = sphi 0, %s312
      %s332 = sphi 0, %s334
      %s335 = sphi 0, %s332
      %s336 = sphi 0, %s335
      %s352 = sphi 0, %s336
    $region4: #{splatflow_attention.1} parent=1 // loop_header_branch
      %26 = sbr.rel (%p24) target = $region8
    $region5: #{splatflow_attention.1} parent=1 // loop_body
      %s28 = ssub.s32 %s23, 1
      %s29 = ssub.s32 %s23, 2
      %s30 = sadd.s32 %s23, 1
      %s31 = ssub.s32 %s23, %s30
      %p32 = scmp.eq.s32.totalorder %s31, 0
      %s34 = sadd.s32 %s33, 1
      %s35 = scalar_select %p32, %s33, %s34
      %p38 = pneg %p32
      %p39 = scmp.eq.s32.totalorder %s23, 1
      %p40 = por %p38, %p39
      %p41 = scmp.ne.s32.totalorder %s33, %s36
      %p42 = scmp.eq.s32.totalorder %s23, 0
      %p43 = por %p41, %p42
      %p44 = scmp.ne.s32.totalorder %s33, %s36
      %p45 = scmp.eq.s32.totalorder %s28, 1
      %p46 = por %p44, %p45
      %p47 = scmp.ne.s32.totalorder %s36, %s37
      %p48 = scmp.eq.s32.totalorder %s28, 0
      %p49 = por %p47, %p48
      %p50 = scmp.ne.s32.totalorder %s36, %s37
      %p51 = scmp.eq.s32.totalorder %s29, 1
      %p52 = por %p50, %p51
      %p54 = scmp.ne.s32.totalorder %s37, %s53
      %p55 = scmp.eq.s32.totalorder %s29, 0
      %p56 = por %p54, %p55
      %s58 = sadd.s32 %s57, 1
      %p61 = scmp.eq.s32.totalorder %s23, 1
      %p62 = scmp.ne.s32.totalorder %s57, %s59
      %p63 = scmp.eq.s32.totalorder %s23, 0
      %p64 = por %p62, %p63
      %p65 = scmp.ne.s32.totalorder %s57, %s59
      %p66 = scmp.eq.s32.totalorder %s28, 1
      %p67 = por %p65, %p66
      %p68 = scmp.ne.s32.totalorder %s59, %s60
      %p69 = scmp.eq.s32.totalorder %s28, 0
      %p70 = por %p68, %p69
      %p71 = scmp.ne.s32.totalorder %s59, %s60
      %p72 = scmp.eq.s32.totalorder %s29, 1
      %p73 = por %p71, %p72
      %p75 = scmp.ne.s32.totalorder %s60, %s74
      %p76 = scmp.eq.s32.totalorder %s29, 0
      %p77 = por %p75, %p76
      %s79 = sadd.s32 %s78, 1
      %p82 = scmp.eq.s32.totalorder %s23, 1
      %p83 = scmp.ne.s32.totalorder %s78, %s80
      %p84 = scmp.eq.s32.totalorder %s23, 0
      %p85 = por %p83, %p84
      %p86 = scmp.ne.s32.totalorder %s78, %s80
      %p87 = scmp.eq.s32.totalorder %s28, 1
      %p88 = por %p86, %p87
      %p89 = scmp.ne.s32.totalorder %s80, %s81
      %p90 = scmp.eq.s32.totalorder %s28, 0
      %p91 = por %p89, %p90
      %p92 = scmp.ne.s32.totalorder %s80, %s81
      %p93 = scmp.eq.s32.totalorder %s29, 1
      %p94 = por %p92, %p93
      %p96 = scmp.ne.s32.totalorder %s81, %s95
      %p97 = scmp.eq.s32.totalorder %s29, 0
      %p98 = por %p96, %p97
      %s100 = sadd.s32 %s99, 1
      %p103 = scmp.eq.s32.totalorder %s23, 1
      %p104 = scmp.ne.s32.totalorder %s99, %s101
      %p105 = scmp.eq.s32.totalorder %s23, 0
      %p106 = por %p104, %p105
      %p107 = scmp.ne.s32.totalorder %s99, %s101
      %p108 = scmp.eq.s32.totalorder %s28, 1
      %p109 = por %p107, %p108
      %p110 = scmp.ne.s32.totalorder %s101, %s102
      %p111 = scmp.eq.s32.totalorder %s28, 0
      %p112 = por %p110, %p111
      %p113 = scmp.ne.s32.totalorder %s101, %s102
      %p114 = scmp.eq.s32.totalorder %s29, 1
      %p115 = por %p113, %p114
      %p117 = scmp.ne.s32.totalorder %s102, %s116
      %p118 = scmp.eq.s32.totalorder %s29, 0
      %p119 = por %p117, %p118
      %s121 = sadd.s32 %s120, 1
      %p124 = scmp.eq.s32.totalorder %s23, 1
      %p125 = scmp.ne.s32.totalorder %s120, %s122
      %p126 = scmp.eq.s32.totalorder %s23, 0
      %p127 = por %p125, %p126
      %p128 = scmp.ne.s32.totalorder %s120, %s122
      %p129 = scmp.eq.s32.totalorder %s28, 1
      %p130 = por %p128, %p129
      %p131 = scmp.ne.s32.totalorder %s122, %s123
      %p132 = scmp.eq.s32.totalorder %s28, 0
      %p133 = por %p131, %p132
      %p134 = scmp.ne.s32.totalorder %s122, %s123
      %p135 = scmp.eq.s32.totalorder %s29, 1
      %p136 = por %p134, %p135
      %p138 = scmp.ne.s32.totalorder %s123, %s137
      %p139 = scmp.eq.s32.totalorder %s29, 0
      %p140 = por %p138, %p139
      %s142 = sadd.s32 %s141, 1
      %p145 = scmp.eq.s32.totalorder %s23, 1
      %p146 = scmp.ne.s32.totalorder %s141, %s143
      %p147 = scmp.eq.s32.totalorder %s23, 0
      %p148 = por %p146, %p147
      %p149 = scmp.ne.s32.totalorder %s141, %s143
      %p150 = scmp.eq.s32.totalorder %s28, 1
      %p151 = por %p149, %p150
      %p152 = scmp.ne.s32.totalorder %s143, %s144
      %p153 = scmp.eq.s32.totalorder %s28, 0
      %p154 = por %p152, %p153
      %p155 = scmp.ne.s32.totalorder %s143, %s144
      %p156 = scmp.eq.s32.totalorder %s29, 1
      %p157 = por %p155, %p156
      %p159 = scmp.ne.s32.totalorder %s144, %s158
      %p160 = scmp.eq.s32.totalorder %s29, 0
      %p161 = por %p159, %p160
      %s163 = sadd.s32 %s162, 1
      %p166 = scmp.eq.s32.totalorder %s23, 1
      %p167 = scmp.ne.s32.totalorder %s162, %s164
      %p168 = scmp.eq.s32.totalorder %s23, 0
      %p169 = por %p167, %p168
      %p170 = scmp.ne.s32.totalorder %s162, %s164
      %p171 = scmp.eq.s32.totalorder %s28, 1
      %p172 = por %p170, %p171
      %p173 = scmp.ne.s32.totalorder %s164, %s165
      %p174 = scmp.eq.s32.totalorder %s28, 0
      %p175 = por %p173, %p174
      %p176 = scmp.ne.s32.totalorder %s164, %s165
      %p177 = scmp.eq.s32.totalorder %s29, 1
      %p178 = por %p176, %p177
      %p180 = scmp.ne.s32.totalorder %s165, %s179
      %p181 = scmp.eq.s32.totalorder %s29, 0
      %p182 = por %p180, %p181
      %s184 = sadd.s32 %s183, 1
      %p187 = scmp.eq.s32.totalorder %s23, 1
      %p188 = scmp.ne.s32.totalorder %s183, %s185
      %p189 = scmp.eq.s32.totalorder %s23, 0
      %p190 = por %p188, %p189
      %p191 = scmp.ne.s32.totalorder %s183, %s185
      %p192 = scmp.eq.s32.totalorder %s28, 1
      %p193 = por %p191, %p192
      %p194 = scmp.ne.s32.totalorder %s185, %s186
      %p195 = scmp.eq.s32.totalorder %s28, 0
      %p196 = por %p194, %p195
      %p197 = scmp.ne.s32.totalorder %s185, %s186
      %p198 = scmp.eq.s32.totalorder %s29, 1
      %p199 = por %p197, %p198
      %p201 = scmp.ne.s32.totalorder %s186, %s200
      %p202 = scmp.eq.s32.totalorder %s29, 0
      %p203 = por %p201, %p202
      %s205 = sadd.s32 %s204, 1
      %p208 = scmp.eq.s32.totalorder %s23, 1
      %p209 = scmp.ne.s32.totalorder %s204, %s206
      %p210 = scmp.eq.s32.totalorder %s23, 0
      %p211 = por %p209, %p210
      %p212 = scmp.ne.s32.totalorder %s204, %s206
      %p213 = scmp.eq.s32.totalorder %s28, 1
      %p214 = por %p212, %p213
      %p215 = scmp.ne.s32.totalorder %s206, %s207
      %p216 = scmp.eq.s32.totalorder %s28, 0
      %p217 = por %p215, %p216
      %p218 = scmp.ne.s32.totalorder %s206, %s207
      %p219 = scmp.eq.s32.totalorder %s29, 1
      %p220 = por %p218, %p219
      %p222 = scmp.ne.s32.totalorder %s207, %s221
      %p223 = scmp.eq.s32.totalorder %s29, 0
      %p224 = por %p222, %p223
      %s226 = sadd.s32 %s225, 1
      %p229 = scmp.eq.s32.totalorder %s23, 1
      %p230 = scmp.ne.s32.totalorder %s225, %s227
      %p231 = scmp.eq.s32.totalorder %s23, 0
      %p232 = por %p230, %p231
      %p233 = scmp.ne.s32.totalorder %s225, %s227
      %p234 = scmp.eq.s32.totalorder %s28, 1
      %p235 = por %p233, %p234
      %p236 = scmp.ne.s32.totalorder %s227, %s228
      %p237 = scmp.eq.s32.totalorder %s28, 0
      %p238 = por %p236, %p237
      %p239 = scmp.ne.s32.totalorder %s227, %s228
      %p240 = scmp.eq.s32.totalorder %s29, 1
      %p241 = por %p239, %p240
      %p243 = scmp.ne.s32.totalorder %s228, %s242
      %p244 = scmp.eq.s32.totalorder %s29, 0
      %p245 = por %p243, %p244
      %s247 = sadd.s32 %s246, 1
      %p250 = scmp.eq.s32.totalorder %s23, 1
      %p251 = scmp.ne.s32.totalorder %s246, %s248
      %p252 = scmp.eq.s32.totalorder %s23, 0
      %p253 = por %p251, %p252
      %p254 = scmp.ne.s32.totalorder %s246, %s248
      %p255 = scmp.eq.s32.totalorder %s28, 1
      %p256 = por %p254, %p255
      %p257 = scmp.ne.s32.totalorder %s248, %s249
      %p258 = scmp.eq.s32.totalorder %s28, 0
      %p259 = por %p257, %p258
      %p260 = scmp.ne.s32.totalorder %s248, %s249
      %p261 = scmp.eq.s32.totalorder %s29, 1
      %p262 = por %p260, %p261
      %p264 = scmp.ne.s32.totalorder %s249, %s263
      %p265 = scmp.eq.s32.totalorder %s29, 0
      %p266 = por %p264, %p265
      %s268 = sadd.s32 %s267, 1
      %p271 = scmp.eq.s32.totalorder %s23, 1
      %p272 = scmp.ne.s32.totalorder %s267, %s269
      %p273 = scmp.eq.s32.totalorder %s23, 0
      %p274 = por %p272, %p273
      %p275 = scmp.ne.s32.totalorder %s267, %s269
      %p276 = scmp.eq.s32.totalorder %s28, 1
      %p277 = por %p275, %p276
      %p278 = scmp.ne.s32.totalorder %s269, %s270
      %p279 = scmp.eq.s32.totalorder %s28, 0
      %p280 = por %p278, %p279
      %p281 = scmp.ne.s32.totalorder %s269, %s270
      %p282 = scmp.eq.s32.totalorder %s29, 1
      %p283 = por %p281, %p282
      %p285 = scmp.ne.s32.totalorder %s270, %s284
      %p286 = scmp.eq.s32.totalorder %s29, 0
      %p287 = por %p285, %p286
      %s289 = sadd.s32 %s288, 1
      %p292 = scmp.eq.s32.totalorder %s23, 1
      %p293 = scmp.ne.s32.totalorder %s288, %s290
      %p294 = scmp.eq.s32.totalorder %s23, 0
      %p295 = por %p293, %p294
      %p296 = scmp.ne.s32.totalorder %s288, %s290
      %p297 = scmp.eq.s32.totalorder %s28, 1
      %p298 = por %p296, %p297
      %p299 = scmp.ne.s32.totalorder %s290, %s291
      %p300 = scmp.eq.s32.totalorder %s28, 0
      %p301 = por %p299, %p300
      %p302 = scmp.ne.s32.totalorder %s290, %s291
      %p303 = scmp.eq.s32.totalorder %s29, 1
      %p304 = por %p302, %p303
      %p306 = scmp.ne.s32.totalorder %s291, %s305
      %p307 = scmp.eq.s32.totalorder %s29, 0
      %p308 = por %p306, %p307
      %s310 = sadd.s32 %s309, 1
      %p313 = scmp.eq.s32.totalorder %s23, 1
      %p314 = scmp.ne.s32.totalorder %s309, %s311
      %p315 = scmp.eq.s32.totalorder %s23, 0
      %p316 = por %p314, %p315
      %p317 = scmp.ne.s32.totalorder %s309, %s311
      %p318 = scmp.eq.s32.totalorder %s28, 1
      %p319 = por %p317, %p318
      %p320 = scmp.ne.s32.totalorder %s311, %s312
      %p321 = scmp.eq.s32.totalorder %s28, 0
      %p322 = por %p320, %p321
      %p323 = scmp.ne.s32.totalorder %s311, %s312
      %p324 = scmp.eq.s32.totalorder %s29, 1
      %p325 = por %p323, %p324
      %p327 = scmp.ne.s32.totalorder %s312, %s326
      %p328 = scmp.eq.s32.totalorder %s29, 0
      %p329 = por %p327, %p328
      %s330 = ssub.s32 %s23, %s30
      %p331 = scmp.eq.s32.totalorder %s330, 0
      %s333 = sadd.s32 %s332, 1
      %s334 = scalar_select %p331, %s332, %s333
      %p337 = pneg %p331
      %p338 = scmp.eq.s32.totalorder %s23, 1
      %p339 = por %p337, %p338
      %p340 = scmp.ne.s32.totalorder %s332, %s335
      %p341 = scmp.eq.s32.totalorder %s23, 0
      %p342 = por %p340, %p341
      %p343 = scmp.ne.s32.totalorder %s332, %s335
      %p344 = scmp.eq.s32.totalorder %s28, 1
      %p345 = por %p343, %p344
      %p346 = scmp.ne.s32.totalorder %s335, %s336
      %p347 = scmp.eq.s32.totalorder %s28, 0
      %p348 = por %p346, %p347
      %p349 = scmp.ne.s32.totalorder %s335, %s336
      %p350 = scmp.eq.s32.totalorder %s29, 1
      %p351 = por %p349, %p350
      %p353 = scmp.ne.s32.totalorder %s336, %s352
      %p354 = scmp.eq.s32.totalorder %s29, 0
      %p355 = por %p353, %p354
      %p356 = scmp.le.s32.totalorder 1, %s23
      %p357 = scmp.lt.s32.totalorder %s23, 3
      %p358 = pnand %p356, %p357
      %p359 = pneg %p358
      // Predicated region
      $region9: #{splatflow_attention.1} parent=5 // pred_check
        _
      $region10: #{splatflow_attention.1} parent=5 // pred_check_branch
        %361 = sbr.rel (%p358) target = $region12
      $region11: #{splatflow_attention.1} parent=5 // pred_region
        %s362 = ssub.s32 %s23, 1
        // Predicated region
        $region13: #{splatflow_attention.1} parent=11 // pred_check
          %p363 = pneg %p70
        $region14: #{splatflow_attention.1} parent=11 // pred_check_branch
          %365 = sbr.rel (%p363) target = $region16
        $region15: #{splatflow_attention.1} parent=11 // pred_region
          _
        $region16: #{splatflow_attention.1} parent=11 // pred_fallthru
          _
        // Predicated region
        $region17: #{splatflow_attention.1} parent=11 // pred_check
          %p366 = pneg %p91
        $region18: #{splatflow_attention.1} parent=11 // pred_check_branch
          %368 = sbr.rel (%p366) target = $region20
        $region19: #{splatflow_attention.1} parent=11 // pred_region
          _
        $region20: #{splatflow_attention.1} parent=11 // pred_fallthru
          _
        // Predicated region
        $region21: #{splatflow_attention.1} parent=11 // pred_check
          %p369 = pneg %p112
        $region22: #{splatflow_attention.1} parent=11 // pred_check_branch
          %371 = sbr.rel (%p369) target = $region24
        $region23: #{splatflow_attention.1} parent=11 // pred_region
          _
        $region24: #{splatflow_attention.1} parent=11 // pred_fallthru
          _
        // Predicated region
        $region25: #{splatflow_attention.1} parent=11 // pred_check
          %p372 = pneg %p133
        $region26: #{splatflow_attention.1} parent=11 // pred_check_branch
          %374 = sbr.rel (%p372) target = $region28
        $region27: #{splatflow_attention.1} parent=11 // pred_region
          _
        $region28: #{splatflow_attention.1} parent=11 // pred_fallthru
          _
        // Predicated region
        $region29: #{splatflow_attention.1} parent=11 // pred_check
          %p375 = pneg %p154
        $region30: #{splatflow_attention.1} parent=11 // pred_check_branch
          %377 = sbr.rel (%p375) target = $region32
        $region31: #{splatflow_attention.1} parent=11 // pred_region
          _
        $region32: #{splatflow_attention.1} parent=11 // pred_fallthru
          _
        // Predicated region
        $region33: #{splatflow_attention.1} parent=11 // pred_check
          %p378 = pneg %p175
        $region34: #{splatflow_attention.1} parent=11 // pred_check_branch
          %380 = sbr.rel (%p378) target = $region36
        $region35: #{splatflow_attention.1} parent=11 // pred_region
          _
        $region36: #{splatflow_attention.1} parent=11 // pred_fallthru
          _
        // Predicated region
        $region37: #{splatflow_attention.1} parent=11 // pred_check
          %p381 = pneg %p196
        $region38: #{splatflow_attention.1} parent=11 // pred_check_branch
          %383 = sbr.rel (%p381) target = $region40
        $region39: #{splatflow_attention.1} parent=11 // pred_region
          _
        $region40: #{splatflow_attention.1} parent=11 // pred_fallthru
          _
        // Predicated region
        $region41: #{splatflow_attention.1} parent=11 // pred_check
          %p384 = pneg %p217
        $region42: #{splatflow_attention.1} parent=11 // pred_check_branch
          %386 = sbr.rel (%p384) target = $region44
        $region43: #{splatflow_attention.1} parent=11 // pred_region
          _
        $region44: #{splatflow_attention.1} parent=11 // pred_fallthru
          _
        // Predicated region
        $region45: #{splatflow_attention.1} parent=11 // pred_check
          %p387 = pneg %p238
        $region46: #{splatflow_attention.1} parent=11 // pred_check_branch
          %389 = sbr.rel (%p387) target = $region48
        $region47: #{splatflow_attention.1} parent=11 // pred_region
          _
        $region48: #{splatflow_attention.1} parent=11 // pred_fallthru
          _
        // Predicated region
        $region49: #{splatflow_attention.1} parent=11 // pred_check
          %p390 = pneg %p259
        $region50: #{splatflow_attention.1} parent=11 // pred_check_branch
          %392 = sbr.rel (%p390) target = $region52
        $region51: #{splatflow_attention.1} parent=11 // pred_region
          _
        $region52: #{splatflow_attention.1} parent=11 // pred_fallthru
          _
        // Predicated region
        $region53: #{splatflow_attention.1} parent=11 // pred_check
          %p393 = pneg %p280
        $region54: #{splatflow_attention.1} parent=11 // pred_check_branch
          %395 = sbr.rel (%p393) target = $region56
        $region55: #{splatflow_attention.1} parent=11 // pred_region
          _
        $region56: #{splatflow_attention.1} parent=11 // pred_fallthru
          _
        // Predicated region
        $region57: #{splatflow_attention.1} parent=11 // pred_check
          %p396 = pneg %p301
        $region58: #{splatflow_attention.1} parent=11 // pred_check_branch
          %398 = sbr.rel (%p396) target = $region60
        $region59: #{splatflow_attention.1} parent=11 // pred_region
          _
        $region60: #{splatflow_attention.1} parent=11 // pred_fallthru
          _
        // Predicated region
        $region61: #{splatflow_attention.1} parent=11 // pred_check
          %p399 = pneg %p322
        $region62: #{splatflow_attention.1} parent=11 // pred_check_branch
          %401 = sbr.rel (%p399) target = $region64
        $region63: #{splatflow_attention.1} parent=11 // pred_region
          _
        $region64: #{splatflow_attention.1} parent=11 // pred_fallthru
          _
      $region12: #{splatflow_attention.1} parent=5 // pred_fallthru
        _
      %p402 = scmp.lt.s32.totalorder %s23, 2
      // Predicated region
      $region65: #{splatflow_attention.1} parent=5 // pred_check
        %p403 = pneg %p402
      $region66: #{splatflow_attention.1} parent=5 // pred_check_branch
        %405 = sbr.rel (%p403) target = $region68
      $region67: #{splatflow_attention.1} parent=5 // pred_region
        // Predicated region
        $region69: #{splatflow_attention.1} parent=67 // pred_check
          %p406 = pneg %p43
        $region70: #{splatflow_attention.1} parent=67 // pred_check_branch
          %408 = sbr.rel (%p406) target = $region72
        $region71: #{splatflow_attention.1} parent=67 // pred_region
          %p409 = scmp.lt.s32.totalorder %s23, 1
          %s410 = scalar_select %p409, %s23, 1
          %s411 = smul.addr %s410, 8
          %s412 = scalar_lea.vmem %s0, %s411
        $region72: #{splatflow_attention.1} parent=67 // pred_fallthru
          _
      $region68: #{splatflow_attention.1} parent=5 // pred_fallthru
        _
      %p413 = scmp.le.s32.totalorder 1, %s23
      %p414 = scmp.lt.s32.totalorder %s23, 3
      %p415 = pnand %p413, %p414
      %p416 = pneg %p415
      // Predicated region
      $region73: #{splatflow_attention.1} parent=5 // pred_check
        _
      $region74: #{splatflow_attention.1} parent=5 // pred_check_branch
        %418 = sbr.rel (%p415) target = $region76
      $region75: #{splatflow_attention.1} parent=5 // pred_region
        %s419 = ssub.s32 %s23, 1
        %p420 = scmp.lt.s32.totalorder %s28, 1
        %s421 = scalar_select %p420, %s28, 1
        %s422 = smul.addr %s421, 8
        %s423 = scalar_lea.vmem %s0, %s422
        %p424 = pneg %p49
        %p425 = pneg %p46
        %p426 = pneg %p70
        %p427 = pneg %p67
        %p428 = pneg %p91
        %p429 = pneg %p88
        %p430 = pneg %p112
        %p431 = pneg %p109
        %p432 = pneg %p133
        %p433 = pneg %p130
        %p434 = pneg %p154
        %p435 = pneg %p151
        %p436 = pneg %p175
        %p437 = pneg %p172
        %p438 = pneg %p196
        %p439 = pneg %p193
        %p440 = pneg %p217
        %p441 = pneg %p214
        %p442 = pneg %p238
        %p443 = pneg %p235
        %p444 = pneg %p259
        %p445 = pneg %p256
        %p446 = pneg %p280
        %p447 = pneg %p277
        %p448 = pneg %p301
        %p449 = pneg %p298
        %p450 = pneg %p322
        %p451 = pneg %p319
        %p452 = pneg %p348
        %p453 = pneg %p345
        %s454 = sand.u32 %s335, 1
        %s455 = scalar_lea.sflag [#allocation3], %s454
        %s456 = sand.u32 %s335, 1
        %s457 = smul.addr %s456, 8
        %s458 = scalar_lea.vmem [#allocation2], %s457
        %p459 = scmp.lt.s32.totalorder %s28, 1
        %s460 = scalar_select %p459, %s28, 1
        %s461 = smul.addr %s460, 8
        %s462 = scalar_lea.vmem %s0, %s461
        %v463 = vld [vmem:[%s462] sm:$0xff]
        %v464 = vld [vmem:[%s1] sm:$0xff]
        %v465 = vmul.f32 %v463, %v463
        %vm466 = vcmask 261120
        %v467 = vsel %vm466, %v465, 0.0
        %468 = vadd.xlane.f32.xlu0 %v467
        %v469 = vpop.xlane.xlu0 %468
        %v471 = vsel %vm466, %v463, 0
        %v474 = vsel %vm466, %v464, 0
        %476 = vmatprep.subr.mxu0 0.0
        %477 = vmatpush1.xpose.msra.mxu0 0.0
        %478 = vmatprep.subr.mxu0 0.0
        %479 = vmatpush1.xpose.msra.mxu0 0.0
        %480 = vmatprep.subr.mxu0 0.0
        %481 = vmatpush1.xpose.msra.mxu0 0.0
        %482 = vmatprep.subr.mxu0 0.0
        %483 = vmatpush1.xpose.msra.mxu0 0.0
        %484 = vmatprep.subr.mxu0 0.0
        %485 = vmatpush1.xpose.msra.mxu0 0.0
        %486 = vmatprep.subr.mxu0 0.0
        %487 = vmatpush1.xpose.msra.mxu0 0.0
        %488 = vmatprep.subr.mxu0 0.0
        %489 = vmatpush1.xpose.msra.mxu0 0.0
        %490 = vmatprep.subr.mxu0 0.0
        %491 = vmatpush1.xpose.msra.mxu0 0.0
        %492 = vmatprep.subr.mxu0 0.0
        %493 = vmatpush1.xpose.msra.mxu0 0.0
        %494 = vmatprep.subr.mxu0 0.0
        %495 = vmatpush1.xpose.msra.mxu0 0.0
        %496 = vmatprep.subr.mxu0 0.0
        %497 = vmatpush1.xpose.msra.mxu0 0.0
        %498 = vmatprep.subr.mxu0 0.0
        %499 = vmatpush1.xpose.msra.mxu0 0.0
        %500 = vmatprep.subr.mxu0 0.0
        %501 = vmatpush1.xpose.msra.mxu0 0.0
        %502 = vmatprep.subr.mxu0 0.0
        %503 = vmatpush1.xpose.msra.mxu0 0.0
        %504 = vmatprep.subr.mxu0 0.0
        %505 = vmatpush1.xpose.msra.mxu0 0.0
        %506 = vmatprep.subr.mxu0 0.0
        %507 = vmatpush1.xpose.msra.mxu0 %v474
        %508 = vmatprep.subr.mxu0 0.0
        %509 = vmatpush2.xpose.msra.mxu0 0.0
        %510 = vmatprep.subr.mxu0 0.0
        %511 = vmatpush2.xpose.msra.mxu0 0.0
        %512 = vmatprep.subr.mxu0 0.0
        %513 = vmatpush2.xpose.msra.mxu0 0.0
        %514 = vmatprep.subr.mxu0 0.0
        %515 = vmatpush2.xpose.msra.mxu0 0.0
        %516 = vmatprep.subr.mxu0 0.0
        %517 = vmatpush2.xpose.msra.mxu0 0.0
        %518 = vmatprep.subr.mxu0 0.0
        %519 = vmatpush2.xpose.msra.mxu0 0.0
        %520 = vmatprep.subr.mxu0 0.0
        %521 = vmatpush2.xpose.msra.mxu0 0.0
        %522 = vmatprep.subr.mxu0 0.0
        %523 = vmatpush2.xpose.msra.mxu0 0.0
        %524 = vmatprep.subr.mxu0 0.0
        %525 = vmatpush2.xpose.msra.mxu0 0.0
        %526 = vmatprep.subr.mxu0 0.0
        %527 = vmatpush2.xpose.msra.mxu0 0.0
        %528 = vmatprep.subr.mxu0 0.0
        %529 = vmatpush2.xpose.msra.mxu0 0.0
        %530 = vmatprep.subr.mxu0 0.0
        %531 = vmatpush2.xpose.msra.mxu0 0.0
        %532 = vmatprep.subr.mxu0 0.0
        %533 = vmatpush2.xpose.msra.mxu0 0.0
        %534 = vmatprep.subr.mxu0 0.0
        %535 = vmatpush2.xpose.msra.mxu0 0.0
        %536 = vmatprep.subr.mxu0 0.0
        %537 = vmatpush2.xpose.msra.mxu0 0.0
        %538 = vmatprep.subr.mxu0 0.0
        %539 = vmatpush2.xpose.msra.mxu0 0.0
        %540 = vmatprep.mubr.f32.mxu0 0.0
        %541 = vmatmul.mubr.f32.gmra.mxu0 %v471
        %v542 = vpop.f32.mrf.mxu0
        %v543 = vadd.f32 0.0, %v542
        %v544 = vpop.f32.mrf.mxu0
        %545 = vdwg.mxu0
        %v546 = vld [vmem:[%s2] sm:$0x1]
        %v548 = vlaneseq
        %v549 = vshrl.u32 %v548, 7
        %v550 = vsub.s32 0, %v549
        %v551 = vrot.slane %v546, %v550
        %v553 = vadd.f32 %v469, %v551
        %v554 = vmul.f32 %v543, 2.0
        %v555 = vsub.f32 %v553, %v554
        %v556 = vmax.f32 %v555, 0.0
        %v557 = vsub.f32 0.0, %v556
        %v558 = vld [vmem:[%s3] sm:$0x1]
        %v560 = vlaneseq
        %v561 = vshrl.u32 %v560, 7
        %v562 = vsub.s32 0, %v561
        %v563 = vrot.slane %v558, %v562
        %v565 = vmul.f32 %v557, %v563
        %v566 = vmul.f32 %v565, 1.442695
        %v567 = vpow.pop %v566
        %v568 = vld [vmem:[%s4] sm:$0x1]
        %v570 = vlaneseq
        %v571 = vshrl.u32 %v570, 7
        %v572 = vsub.s32 0, %v571
        %v573 = vrot.slane %v568, %v572
        %v575 = vmul.f32 %v567, %v573
        %vm576 = vcmask 64512
        %v577 = vsel %vm576, %v575, 0.0
        %v578 = vrot.slane %v577, 4
        %v579 = vadd.f32 %v577, %v578
        %v580 = vrot.slane %v579, 2
        %v581 = vadd.f32 %v579, %v580
        %v582 = vrot.slane %v581, 1
        %v583 = vadd.f32 %v581, %v582
        %v584 = vmax.f32 %v583, 1e-08
        %v585 = vrcp.pop %v584
        %v586 = vmul.f32 %v575, %v585
        %587 = vxpose.xlu0.b32.start [1/16] %v586, 128
        %588 = vxpose.xlu0.b32.cont [2/16] 0.0, 128
        %589 = vxpose.xlu0.b32.cont [3/16] 0.0, 128
        %590 = vxpose.xlu0.b32.cont [4/16] 0.0, 128
        %591 = vxpose.xlu0.b32.cont [5/16] 0.0, 128
        %592 = vxpose.xlu0.b32.cont [6/16] 0.0, 128
        %593 = vxpose.xlu0.b32.cont [7/16] 0.0, 128
        %594 = vxpose.xlu0.b32.cont [8/16] 0.0, 128
        %595 = vxpose.xlu0.b32.cont [9/16] 0.0, 128
        %596 = vxpose.xlu0.b32.cont [10/16] 0.0, 128
        %597 = vxpose.xlu0.b32.cont [11/16] 0.0, 128
        %598 = vxpose.xlu0.b32.cont [12/16] 0.0, 128
        %599 = vxpose.xlu0.b32.cont [13/16] 0.0, 128
        %600 = vxpose.xlu0.b32.cont [14/16] 0.0, 128
        %601 = vxpose.xlu0.b32.cont [15/16] 0.0, 128
        %602 = vxpose.xlu0.b32.end [16/16] 0.0, 128
        %v603 = vpop.trf.xlu0
        %v604 = vpop.trf.xlu0
        %v605 = vpop.trf.xlu0
        %v606 = vpop.trf.xlu0
        %v607 = vpop.trf.xlu0
        %v608 = vpop.trf.xlu0
        %v609 = vpop.trf.xlu0
        %v610 = vpop.trf.xlu0
        %v611 = vpop.trf.xlu0
        %v612 = vpop.trf.xlu0
        %v613 = vpop.trf.xlu0
        %v614 = vpop.trf.xlu0
        %v615 = vpop.trf.xlu0
        %v616 = vpop.trf.xlu0
        %v617 = vpop.trf.xlu0
        %v618 = vpop.trf.xlu0
        %v620 = vsel %vm576, %v603, 0
        %622 = vmatprep.subr.mxu0 0.0
        %623 = vmatpush1.msra.mxu0 0.0
        %624 = vmatprep.subr.mxu0 0.0
        %625 = vmatpush1.msra.mxu0 0.0
        %626 = vmatprep.subr.mxu0 0.0
        %627 = vmatpush1.msra.mxu0 0.0
        %628 = vmatprep.subr.mxu0 0.0
        %629 = vmatpush1.msra.mxu0 0.0
        %630 = vmatprep.subr.mxu0 0.0
        %631 = vmatpush1.msra.mxu0 0.0
        %632 = vmatprep.subr.mxu0 0.0
        %633 = vmatpush1.msra.mxu0 0.0
        %634 = vmatprep.subr.mxu0 0.0
        %635 = vmatpush1.msra.mxu0 0.0
        %636 = vmatprep.subr.mxu0 0.0
        %637 = vmatpush1.msra.mxu0 0.0
        %638 = vmatprep.subr.mxu0 0.0
        %639 = vmatpush1.msra.mxu0 0.0
        %640 = vmatprep.subr.mxu0 0.0
        %641 = vmatpush1.msra.mxu0 0.0
        %642 = vmatprep.subr.mxu0 0.0
        %643 = vmatpush1.msra.mxu0 0.0
        %644 = vmatprep.subr.mxu0 0.0
        %645 = vmatpush1.msra.mxu0 0.0
        %646 = vmatprep.subr.mxu0 0.0
        %647 = vmatpush1.msra.mxu0 0.0
        %648 = vmatprep.subr.mxu0 0.0
        %649 = vmatpush1.msra.mxu0 0.0
        %650 = vmatprep.subr.mxu0 0.0
        %651 = vmatpush1.msra.mxu0 0.0
        %652 = vmatprep.subr.mxu0 0.0
        %653 = vmatpush1.msra.mxu0 %v463
        %654 = vmatprep.subr.mxu0 0.0
        %655 = vmatpush2.msra.mxu0 0.0
        %656 = vmatprep.subr.mxu0 0.0
        %657 = vmatpush2.msra.mxu0 0.0
        %658 = vmatprep.subr.mxu0 0.0
        %659 = vmatpush2.msra.mxu0 0.0
        %660 = vmatprep.subr.mxu0 0.0
        %661 = vmatpush2.msra.mxu0 0.0
        %662 = vmatprep.subr.mxu0 0.0
        %663 = vmatpush2.msra.mxu0 0.0
        %664 = vmatprep.subr.mxu0 0.0
        %665 = vmatpush2.msra.mxu0 0.0
        %666 = vmatprep.subr.mxu0 0.0
        %667 = vmatpush2.msra.mxu0 0.0
        %668 = vmatprep.subr.mxu0 0.0
        %669 = vmatpush2.msra.mxu0 0.0
        %670 = vmatprep.subr.mxu0 0.0
        %671 = vmatpush2.msra.mxu0 0.0
        %672 = vmatprep.subr.mxu0 0.0
        %673 = vmatpush2.msra.mxu0 0.0
        %674 = vmatprep.subr.mxu0 0.0
        %675 = vmatpush2.msra.mxu0 0.0
        %676 = vmatprep.subr.mxu0 0.0
        %677 = vmatpush2.msra.mxu0 0.0
        %678 = vmatprep.subr.mxu0 0.0
        %679 = vmatpush2.msra.mxu0 0.0
        %680 = vmatprep.subr.mxu0 0.0
        %681 = vmatpush2.msra.mxu0 0.0
        %682 = vmatprep.subr.mxu0 0.0
        %683 = vmatpush2.msra.mxu0 0.0
        %684 = vmatprep.subr.mxu0 0.0
        %685 = vmatpush2.msra.mxu0 0.0
        %686 = vmatprep.mubr.f32.mxu0 0.0
        %687 = vmatmul.mubr.f32.gmra.mxu0 %v620
        %v688 = vpop.f32.mrf.mxu0
        %v689 = vadd.f32 0.0, %v688
        %v690 = vpop.f32.mrf.mxu0
        %691 = vdwg.mxu0
        %v692 = vld [vmem:[%s5] sm:$0xff]
        %v693 = vld [vmem:[%s5 + $0x8] sm:$0xff]
        %v694 = vld [vmem:[%s5 + $0x10] sm:$0xff]
        %v695 = vld [vmem:[%s5 + $0x18] sm:$0xff]
        %v696 = vld [vmem:[%s6] sm:$0x1]
        %v698 = vlaneseq
        %v699 = vshrl.u32 %v698, 7
        %v700 = vsub.s32 0, %v699
        %v701 = vrot.slane %v696, %v700
        %v704 = vsel %vm466, %v689, 0
        %706 = vmatprep.subr.mxu0 0.0
        %707 = vmatpush1.msra.mxu0 0.0
        %708 = vmatprep.subr.mxu0 0.0
        %709 = vmatpush1.msra.mxu0 0.0
        %710 = vmatprep.subr.mxu0 0.0
        %711 = vmatpush1.msra.mxu0 0.0
        %712 = vmatprep.subr.mxu0 0.0
        %713 = vmatpush1.msra.mxu0 0.0
        %714 = vmatprep.subr.mxu0 0.0
        %715 = vmatpush1.msra.mxu0 0.0
        %716 = vmatprep.subr.mxu0 0.0
        %717 = vmatpush1.msra.mxu0 0.0
        %718 = vmatprep.subr.mxu0 0.0
        %719 = vmatpush1.msra.mxu0 0.0
        %720 = vmatprep.subr.mxu0 0.0
        %721 = vmatpush1.msra.mxu0 0.0
        %722 = vmatprep.subr.mxu0 0.0
        %723 = vmatpush1.msra.mxu0 0.0
        %724 = vmatprep.subr.mxu0 0.0
        %725 = vmatpush1.msra.mxu0 0.0
        %726 = vmatprep.subr.mxu0 0.0
        %727 = vmatpush1.msra.mxu0 0.0
        %728 = vmatprep.subr.mxu0 0.0
        %729 = vmatpush1.msra.mxu0 0.0
        %730 = vmatprep.subr.mxu0 0.0
        %731 = vmatpush1.msra.mxu0 %v695
        %732 = vmatprep.subr.mxu0 0.0
        %733 = vmatpush1.msra.mxu0 %v694
        %734 = vmatprep.subr.mxu0 0.0
        %735 = vmatpush1.msra.mxu0 %v693
        %736 = vmatprep.subr.mxu0 0.0
        %737 = vmatpush1.msra.mxu0 %v692
        %738 = vmatprep.subr.mxu0 0.0
        %739 = vmatpush2.msra.mxu0 0.0
        %740 = vmatprep.subr.mxu0 0.0
        %741 = vmatpush2.msra.mxu0 0.0
        %742 = vmatprep.subr.mxu0 0.0
        %743 = vmatpush2.msra.mxu0 0.0
        %744 = vmatprep.subr.mxu0 0.0
        %745 = vmatpush2.msra.mxu0 0.0
        %746 = vmatprep.subr.mxu0 0.0
        %747 = vmatpush2.msra.mxu0 0.0
        %748 = vmatprep.subr.mxu0 0.0
        %749 = vmatpush2.msra.mxu0 0.0
        %750 = vmatprep.subr.mxu0 0.0
        %751 = vmatpush2.msra.mxu0 0.0
        %752 = vmatprep.subr.mxu0 0.0
        %753 = vmatpush2.msra.mxu0 0.0
        %754 = vmatprep.subr.mxu0 0.0
        %755 = vmatpush2.msra.mxu0 0.0
        %756 = vmatprep.subr.mxu0 0.0
        %757 = vmatpush2.msra.mxu0 0.0
        %758 = vmatprep.subr.mxu0 0.0
        %759 = vmatpush2.msra.mxu0 0.0
        %760 = vmatprep.subr.mxu0 0.0
        %761 = vmatpush2.msra.mxu0 0.0
        %762 = vmatprep.subr.mxu0 0.0
        %763 = vmatpush2.msra.mxu0 0.0
        %764 = vmatprep.subr.mxu0 0.0
        %765 = vmatpush2.msra.mxu0 0.0
        %766 = vmatprep.subr.mxu0 0.0
        %767 = vmatpush2.msra.mxu0 0.0
        %768 = vmatprep.subr.mxu0 0.0
        %769 = vmatpush2.msra.mxu0 0.0
        %770 = vmatprep.mubr.f32.mxu0 0.0
        %771 = vmatmul.mubr.f32.gmra.mxu0 %v704
        %v772 = vpop.f32.mrf.mxu0
        %v773 = vadd.f32 %v701, %v772
        %v774 = vpop.f32.mrf.mxu0
        %775 = vdwg.mxu0
        %v776 = vmax.f32 %v773, 0.0
        %v777 = vld [vmem:[%s7] sm:$0xff]
        %v778 = vld [vmem:[%s7 + $0x8] sm:$0xff]
        %vm779 = vcmask 130048
        %v781 = vsel %vm779, %v776, 0
        %783 = vmatprep.subr.mxu0 0.0
        %784 = vmatpush1.msra.mxu0 0.0
        %785 = vmatprep.subr.mxu0 0.0
        %786 = vmatpush1.msra.mxu0 0.0
        %787 = vmatprep.subr.mxu0 0.0
        %788 = vmatpush1.msra.mxu0 0.0
        %789 = vmatprep.subr.mxu0 0.0
        %790 = vmatpush1.msra.mxu0 0.0
        %791 = vmatprep.subr.mxu0 0.0
        %792 = vmatpush1.msra.mxu0 0.0
        %793 = vmatprep.subr.mxu0 0.0
        %794 = vmatpush1.msra.mxu0 0.0
        %795 = vmatprep.subr.mxu0 0.0
        %796 = vmatpush1.msra.mxu0 0.0
        %797 = vmatprep.subr.mxu0 0.0
        %798 = vmatpush1.msra.mxu0 0.0
        %799 = vmatprep.subr.mxu0 0.0
        %800 = vmatpush1.msra.mxu0 0.0
        %801 = vmatprep.subr.mxu0 0.0
        %802 = vmatpush1.msra.mxu0 0.0
        %803 = vmatprep.subr.mxu0 0.0
        %804 = vmatpush1.msra.mxu0 0.0
        %805 = vmatprep.subr.mxu0 0.0
        %806 = vmatpush1.msra.mxu0 0.0
        %807 = vmatprep.subr.mxu0 0.0
        %808 = vmatpush1.msra.mxu0 0.0
        %809 = vmatprep.subr.mxu0 0.0
        %810 = vmatpush1.msra.mxu0 0.0
        %811 = vmatprep.subr.mxu0 0.0
        %812 = vmatpush1.msra.mxu0 %v778
        %813 = vmatprep.subr.mxu0 0.0
        %814 = vmatpush1.msra.mxu0 %v777
        %815 = vmatprep.subr.mxu0 0.0
        %816 = vmatpush2.msra.mxu0 0.0
        %817 = vmatprep.subr.mxu0 0.0
        %818 = vmatpush2.msra.mxu0 0.0
        %819 = vmatprep.subr.mxu0 0.0
        %820 = vmatpush2.msra.mxu0 0.0
        %821 = vmatprep.subr.mxu0 0.0
        %822 = vmatpush2.msra.mxu0 0.0
        %823 = vmatprep.subr.mxu0 0.0
        %824 = vmatpush2.msra.mxu0 0.0
        %825 = vmatprep.subr.mxu0 0.0
        %826 = vmatpush2.msra.mxu0 0.0
        %827 = vmatprep.subr.mxu0 0.0
        %828 = vmatpush2.msra.mxu0 0.0
        %829 = vmatprep.subr.mxu0 0.0
        %830 = vmatpush2.msra.mxu0 0.0
        %831 = vmatprep.subr.mxu0 0.0
        %832 = vmatpush2.msra.mxu0 0.0
        %833 = vmatprep.subr.mxu0 0.0
        %834 = vmatpush2.msra.mxu0 0.0
        %835 = vmatprep.subr.mxu0 0.0
        %836 = vmatpush2.msra.mxu0 0.0
        %837 = vmatprep.subr.mxu0 0.0
        %838 = vmatpush2.msra.mxu0 0.0
        %839 = vmatprep.subr.mxu0 0.0
        %840 = vmatpush2.msra.mxu0 0.0
        %841 = vmatprep.subr.mxu0 0.0
        %842 = vmatpush2.msra.mxu0 0.0
        %843 = vmatprep.subr.mxu0 0.0
        %844 = vmatpush2.msra.mxu0 0.0
        %845 = vmatprep.subr.mxu0 0.0
        %846 = vmatpush2.msra.mxu0 0.0
        %847 = vmatprep.mubr.f32.mxu0 0.0
        %848 = vmatmul.mubr.f32.gmra.mxu0 %v781
        %v849 = vpop.f32.mrf.mxu0
        %v850 = vadd.f32 0.0, %v849
        %v851 = vpop.f32.mrf.mxu0
        %852 = vdwg.mxu0
        %v853 = vlaneseq
        %v854 = vshrl.u32 %v853, 7
        %v855 = vlaneseq
        %v856 = vand.u32 %v855, 127
        %v857 = vmul.u32 %v854, 16
        %vm858 = vcmp.ge.s32.totalorder %v856, %v857
        %v859 = vadd.s32 %v857, 16
        %vm860 = vcmp.lt.s32.totalorder %v856, %v859
        %vm861 = vmand %vm858, %vm860
        %v862 = vsel %vm861, %v850, 0.0
        %v863 = vld [vmem:[%s8] sm:$0xff]
        %v864 = vld [vmem:[%s8 + $0x8] sm:$0xff]
        %v865 = vld [vmem:[%s8 + $0x10] sm:$0xff]
        %v866 = vld [vmem:[%s8 + $0x18] sm:$0xff]
        %v867 = vld [vmem:[%s8 + $0x20] sm:$0xff]
        %v868 = vld [vmem:[%s8 + $0x28] sm:$0xff]
        %v869 = vld [vmem:[%s8 + $0x30] sm:$0xff]
        %v870 = vld [vmem:[%s8 + $0x38] sm:$0xff]
        %v871 = vld [vmem:[%s8 + $0x40] sm:$0xff]
        %v872 = vld [vmem:[%s8 + $0x48] sm:$0xff]
        %v873 = vld [vmem:[%s8 + $0x50] sm:$0xff]
        %v874 = vld [vmem:[%s8 + $0x58] sm:$0xff]
        %v875 = vld [vmem:[%s8 + $0x60] sm:$0xff]
        %v876 = vld [vmem:[%s8 + $0x68] sm:$0xff]
        %v877 = vld [vmem:[%s8 + $0x70] sm:$0xff]
        %v878 = vld [vmem:[%s8 + $0x78] sm:$0xff]
        %v879 = vld [vmem:[%s9] sm:$0xff]
        %880 = vmatprep.subr.mxu0 0.0
        %881 = vmatpush1.msra.mxu0 %v878
        %882 = vmatprep.subr.mxu0 0.0
        %883 = vmatpush1.msra.mxu0 %v877
        %884 = vmatprep.subr.mxu0 0.0
        %885 = vmatpush1.msra.mxu0 %v876
        %886 = vmatprep.subr.mxu0 0.0
        %887 = vmatpush1.msra.mxu0 %v875
        %888 = vmatprep.subr.mxu0 0.0
        %889 = vmatpush1.msra.mxu0 %v874
        %890 = vmatprep.subr.mxu0 0.0
        %891 = vmatpush1.msra.mxu0 %v873
        %892 = vmatprep.subr.mxu0 0.0
        %893 = vmatpush1.msra.mxu0 %v872
        %894 = vmatprep.subr.mxu0 0.0
        %895 = vmatpush1.msra.mxu0 %v871
        %896 = vmatprep.subr.mxu0 0.0
        %897 = vmatpush1.msra.mxu0 %v870
        %898 = vmatprep.subr.mxu0 0.0
        %899 = vmatpush1.msra.mxu0 %v869
        %900 = vmatprep.subr.mxu0 0.0
        %901 = vmatpush1.msra.mxu0 %v868
        %902 = vmatprep.subr.mxu0 0.0
        %903 = vmatpush1.msra.mxu0 %v867
        %904 = vmatprep.subr.mxu0 0.0
        %905 = vmatpush1.msra.mxu0 %v866
        %906 = vmatprep.subr.mxu0 0.0
        %907 = vmatpush1.msra.mxu0 %v865
        %908 = vmatprep.subr.mxu0 0.0
        %909 = vmatpush1.msra.mxu0 %v864
        %910 = vmatprep.subr.mxu0 0.0
        %911 = vmatpush1.msra.mxu0 %v863
        %912 = vmatprep.subr.mxu0 0.0
        %913 = vmatpush2.msra.mxu0 0.0
        %914 = vmatprep.subr.mxu0 0.0
        %915 = vmatpush2.msra.mxu0 0.0
        %916 = vmatprep.subr.mxu0 0.0
        %917 = vmatpush2.msra.mxu0 0.0
        %918 = vmatprep.subr.mxu0 0.0
        %919 = vmatpush2.msra.mxu0 0.0
        %920 = vmatprep.subr.mxu0 0.0
        %921 = vmatpush2.msra.mxu0 0.0
        %922 = vmatprep.subr.mxu0 0.0
        %923 = vmatpush2.msra.mxu0 0.0
        %924 = vmatprep.subr.mxu0 0.0
        %925 = vmatpush2.msra.mxu0 0.0
        %926 = vmatprep.subr.mxu0 0.0
        %927 = vmatpush2.msra.mxu0 0.0
        %928 = vmatprep.subr.mxu0 0.0
        %929 = vmatpush2.msra.mxu0 0.0
        %930 = vmatprep.subr.mxu0 0.0
        %931 = vmatpush2.msra.mxu0 0.0
        %932 = vmatprep.subr.mxu0 0.0
        %933 = vmatpush2.msra.mxu0 0.0
        %934 = vmatprep.subr.mxu0 0.0
        %935 = vmatpush2.msra.mxu0 0.0
        %936 = vmatprep.subr.mxu0 0.0
        %937 = vmatpush2.msra.mxu0 0.0
        %938 = vmatprep.subr.mxu0 0.0
        %939 = vmatpush2.msra.mxu0 0.0
        %940 = vmatprep.subr.mxu0 0.0
        %941 = vmatpush2.msra.mxu0 0.0
        %942 = vmatprep.subr.mxu0 0.0
        %943 = vmatpush2.msra.mxu0 0.0
        %944 = vmatprep.mubr.f32.mxu0 0.0
        %945 = vmatmul.mubr.f32.gmra.mxu0 %v862
        %v946 = vpop.f32.mrf.mxu0
        %v947 = vadd.f32 %v879, %v946
        %v948 = vpop.f32.mrf.mxu0
        %949 = vdwg.mxu0
        %v951 = vsel %vm576, %v575, 0
        %953 = vmatprep.subr.mxu0 0.0
        %954 = vmatpush1.msra.mxu0 0.0
        %955 = vmatprep.subr.mxu0 0.0
        %956 = vmatpush1.msra.mxu0 0.0
        %957 = vmatprep.subr.mxu0 0.0
        %958 = vmatpush1.msra.mxu0 0.0
        %959 = vmatprep.subr.mxu0 0.0
        %960 = vmatpush1.msra.mxu0 0.0
        %961 = vmatprep.subr.mxu0 0.0
        %962 = vmatpush1.msra.mxu0 0.0
        %963 = vmatprep.subr.mxu0 0.0
        %964 = vmatpush1.msra.mxu0 0.0
        %965 = vmatprep.subr.mxu0 0.0
        %966 = vmatpush1.msra.mxu0 0.0
        %967 = vmatprep.subr.mxu0 0.0
        %968 = vmatpush1.msra.mxu0 0.0
        %969 = vmatprep.subr.mxu0 0.0
        %970 = vmatpush1.msra.mxu0 0.0
        %971 = vmatprep.subr.mxu0 0.0
        %972 = vmatpush1.msra.mxu0 0.0
        %973 = vmatprep.subr.mxu0 0.0
        %974 = vmatpush1.msra.mxu0 0.0
        %975 = vmatprep.subr.mxu0 0.0
        %976 = vmatpush1.msra.mxu0 0.0
        %977 = vmatprep.subr.mxu0 0.0
        %978 = vmatpush1.msra.mxu0 0.0
        %979 = vmatprep.subr.mxu0 0.0
        %980 = vmatpush1.msra.mxu0 0.0
        %981 = vmatprep.subr.mxu0 0.0
        %982 = vmatpush1.msra.mxu0 0.0
        %983 = vmatprep.subr.mxu0 0.0
        %984 = vmatpush1.msra.mxu0 %v947
        %985 = vmatprep.subr.mxu0 0.0
        %986 = vmatpush2.msra.mxu0 0.0
        %987 = vmatprep.subr.mxu0 0.0
        %988 = vmatpush2.msra.mxu0 0.0
        %989 = vmatprep.subr.mxu0 0.0
        %990 = vmatpush2.msra.mxu0 0.0
        %991 = vmatprep.subr.mxu0 0.0
        %992 = vmatpush2.msra.mxu0 0.0
        %993 = vmatprep.subr.mxu0 0.0
        %994 = vmatpush2.msra.mxu0 0.0
        %995 = vmatprep.subr.mxu0 0.0
        %996 = vmatpush2.msra.mxu0 0.0
        %997 = vmatprep.subr.mxu0 0.0
        %998 = vmatpush2.msra.mxu0 0.0
        %999 = vmatprep.subr.mxu0 0.0
        %1000 = vmatpush2.msra.mxu0 0.0
        %1001 = vmatprep.subr.mxu0 0.0
        %1002 = vmatpush2.msra.mxu0 0.0
        %1003 = vmatprep.subr.mxu0 0.0
        %1004 = vmatpush2.msra.mxu0 0.0
        %1005 = vmatprep.subr.mxu0 0.0
        %1006 = vmatpush2.msra.mxu0 0.0
        %1007 = vmatprep.subr.mxu0 0.0
        %1008 = vmatpush2.msra.mxu0 0.0
        %1009 = vmatprep.subr.mxu0 0.0
        %1010 = vmatpush2.msra.mxu0 0.0
        %1011 = vmatprep.subr.mxu0 0.0
        %1012 = vmatpush2.msra.mxu0 0.0
        %1013 = vmatprep.subr.mxu0 0.0
        %1014 = vmatpush2.msra.mxu0 0.0
        %1015 = vmatprep.subr.mxu0 0.0
        %1016 = vmatpush2.msra.mxu0 0.0
        %1017 = vmatprep.mubr.f32.mxu0 0.0
        %1018 = vmatmul.mubr.f32.gmra.mxu0 %v951
        %v1019 = vpop.f32.mrf.mxu0
        %v1020 = vadd.f32 0.0, %v1019
        %v1021 = vpop.f32.mrf.mxu0
        %1022 = vdwg.mxu0
        %v1023 = vld [vmem:[%s10] sm:$0xff]
        %v1024 = vld [vmem:[%s10 + $0x8] sm:$0xff]
        %v1025 = vld [vmem:[%s10 + $0x10] sm:$0xff]
        %v1026 = vld [vmem:[%s10 + $0x18] sm:$0xff]
        %v1027 = vld [vmem:[%s11] sm:$0x1]
        %v1029 = vlaneseq
        %v1030 = vshrl.u32 %v1029, 7
        %v1031 = vsub.s32 0, %v1030
        %v1032 = vrot.slane %v1027, %v1031
        %1034 = vmatprep.subr.mxu0 0.0
        %1035 = vmatpush1.msra.mxu0 0.0
        %1036 = vmatprep.subr.mxu0 0.0
        %1037 = vmatpush1.msra.mxu0 0.0
        %1038 = vmatprep.subr.mxu0 0.0
        %1039 = vmatpush1.msra.mxu0 0.0
        %1040 = vmatprep.subr.mxu0 0.0
        %1041 = vmatpush1.msra.mxu0 0.0
        %1042 = vmatprep.subr.mxu0 0.0
        %1043 = vmatpush1.msra.mxu0 0.0
        %1044 = vmatprep.subr.mxu0 0.0
        %1045 = vmatpush1.msra.mxu0 0.0
        %1046 = vmatprep.subr.mxu0 0.0
        %1047 = vmatpush1.msra.mxu0 0.0
        %1048 = vmatprep.subr.mxu0 0.0
        %1049 = vmatpush1.msra.mxu0 0.0
        %1050 = vmatprep.subr.mxu0 0.0
        %1051 = vmatpush1.msra.mxu0 0.0
        %1052 = vmatprep.subr.mxu0 0.0
        %1053 = vmatpush1.msra.mxu0 0.0
        %1054 = vmatprep.subr.mxu0 0.0
        %1055 = vmatpush1.msra.mxu0 0.0
        %1056 = vmatprep.subr.mxu0 0.0
        %1057 = vmatpush1.msra.mxu0 0.0
        %1058 = vmatprep.subr.mxu0 0.0
        %1059 = vmatpush1.msra.mxu0 %v1026
        %1060 = vmatprep.subr.mxu0 0.0
        %1061 = vmatpush1.msra.mxu0 %v1025
        %1062 = vmatprep.subr.mxu0 0.0
        %1063 = vmatpush1.msra.mxu0 %v1024
        %1064 = vmatprep.subr.mxu0 0.0
        %1065 = vmatpush1.msra.mxu0 %v1023
        %1066 = vmatprep.subr.mxu0 0.0
        %1067 = vmatpush2.msra.mxu0 0.0
        %1068 = vmatprep.subr.mxu0 0.0
        %1069 = vmatpush2.msra.mxu0 0.0
        %1070 = vmatprep.subr.mxu0 0.0
        %1071 = vmatpush2.msra.mxu0 0.0
        %1072 = vmatprep.subr.mxu0 0.0
        %1073 = vmatpush2.msra.mxu0 0.0
        %1074 = vmatprep.subr.mxu0 0.0
        %1075 = vmatpush2.msra.mxu0 0.0
        %1076 = vmatprep.subr.mxu0 0.0
        %1077 = vmatpush2.msra.mxu0 0.0
        %1078 = vmatprep.subr.mxu0 0.0
        %1079 = vmatpush2.msra.mxu0 0.0
        %1080 = vmatprep.subr.mxu0 0.0
        %1081 = vmatpush2.msra.mxu0 0.0
        %1082 = vmatprep.subr.mxu0 0.0
        %1083 = vmatpush2.msra.mxu0 0.0
        %1084 = vmatprep.subr.mxu0 0.0
        %1085 = vmatpush2.msra.mxu0 0.0
        %1086 = vmatprep.subr.mxu0 0.0
        %1087 = vmatpush2.msra.mxu0 0.0
        %1088 = vmatprep.subr.mxu0 0.0
        %1089 = vmatpush2.msra.mxu0 0.0
        %1090 = vmatprep.subr.mxu0 0.0
        %1091 = vmatpush2.msra.mxu0 0.0
        %1092 = vmatprep.subr.mxu0 0.0
        %1093 = vmatpush2.msra.mxu0 0.0
        %1094 = vmatprep.subr.mxu0 0.0
        %1095 = vmatpush2.msra.mxu0 0.0
        %1096 = vmatprep.subr.mxu0 0.0
        %1097 = vmatpush2.msra.mxu0 0.0
        %1098 = vmatprep.mubr.f32.mxu0 0.0
        %1099 = vmatmul.mubr.f32.gmra.mxu0 %v471
        %v1100 = vpop.f32.mrf.mxu0
        %v1101 = vadd.f32 %v1032, %v1100
        %v1102 = vpop.f32.mrf.mxu0
        %1103 = vdwg.mxu0
        %v1104 = vxor.u32 %v1101, 2147483648
        %v1105 = vmul.f32 %v1104, 1.442695
        %v1106 = vpow.pop %v1105
        %v1107 = vadd.f32 %v1106, 1.0
        %v1108 = vrcp.pop %v1107
        %v1109 = vmul.f32 1.0, %v1108
        %v1110 = vmul.f32 %v1020, %v1109
        %v1111 = vld [vmem:[%s12] sm:$0xff]
        %v1112 = vld [vmem:[%s12 + $0x8] sm:$0xff]
        %v1113 = vld [vmem:[%s12 + $0x10] sm:$0xff]
        %v1114 = vld [vmem:[%s12 + $0x18] sm:$0xff]
        %1115 = vmatprep.subr.mxu0 0.0
        %1116 = vmatpush1.msra.mxu0 0.0
        %1117 = vmatprep.subr.mxu0 0.0
        %1118 = vmatpush1.msra.mxu0 0.0
        %1119 = vmatprep.subr.mxu0 0.0
        %1120 = vmatpush1.msra.mxu0 0.0
        %1121 = vmatprep.subr.mxu0 0.0
        %1122 = vmatpush1.msra.mxu0 0.0
        %1123 = vmatprep.subr.mxu0 0.0
        %1124 = vmatpush1.msra.mxu0 0.0
        %1125 = vmatprep.subr.mxu0 0.0
        %1126 = vmatpush1.msra.mxu0 0.0
        %1127 = vmatprep.subr.mxu0 0.0
        %1128 = vmatpush1.msra.mxu0 0.0
        %1129 = vmatprep.subr.mxu0 0.0
        %1130 = vmatpush1.msra.mxu0 0.0
        %1131 = vmatprep.subr.mxu0 0.0
        %1132 = vmatpush1.msra.mxu0 0.0
        %1133 = vmatprep.subr.mxu0 0.0
        %1134 = vmatpush1.msra.mxu0 0.0
        %1135 = vmatprep.subr.mxu0 0.0
        %1136 = vmatpush1.msra.mxu0 0.0
        %1137 = vmatprep.subr.mxu0 0.0
        %1138 = vmatpush1.msra.mxu0 0.0
        %1139 = vmatprep.subr.mxu0 0.0
        %1140 = vmatpush1.msra.mxu0 %v1114
        %1141 = vmatprep.subr.mxu0 0.0
        %1142 = vmatpush1.msra.mxu0 %v1113
        %1143 = vmatprep.subr.mxu0 0.0
        %1144 = vmatpush1.msra.mxu0 %v1112
        %1145 = vmatprep.subr.mxu0 0.0
        %1146 = vmatpush1.msra.mxu0 %v1111
        %1147 = vmatprep.subr.mxu0 0.0
        %1148 = vmatpush2.msra.mxu0 0.0
        %1149 = vmatprep.subr.mxu0 0.0
        %1150 = vmatpush2.msra.mxu0 0.0
        %1151 = vmatprep.subr.mxu0 0.0
        %1152 = vmatpush2.msra.mxu0 0.0
        %1153 = vmatprep.subr.mxu0 0.0
        %1154 = vmatpush2.msra.mxu0 0.0
        %1155 = vmatprep.subr.mxu0 0.0
        %1156 = vmatpush2.msra.mxu0 0.0
        %1157 = vmatprep.subr.mxu0 0.0
        %1158 = vmatpush2.msra.mxu0 0.0
        %1159 = vmatprep.subr.mxu0 0.0
        %1160 = vmatpush2.msra.mxu0 0.0
        %1161 = vmatprep.subr.mxu0 0.0
        %1162 = vmatpush2.msra.mxu0 0.0
        %1163 = vmatprep.subr.mxu0 0.0
        %1164 = vmatpush2.msra.mxu0 0.0
        %1165 = vmatprep.subr.mxu0 0.0
        %1166 = vmatpush2.msra.mxu0 0.0
        %1167 = vmatprep.subr.mxu0 0.0
        %1168 = vmatpush2.msra.mxu0 0.0
        %1169 = vmatprep.subr.mxu0 0.0
        %1170 = vmatpush2.msra.mxu0 0.0
        %1171 = vmatprep.subr.mxu0 0.0
        %1172 = vmatpush2.msra.mxu0 0.0
        %1173 = vmatprep.subr.mxu0 0.0
        %1174 = vmatpush2.msra.mxu0 0.0
        %1175 = vmatprep.subr.mxu0 0.0
        %1176 = vmatpush2.msra.mxu0 0.0
        %1177 = vmatprep.subr.mxu0 0.0
        %1178 = vmatpush2.msra.mxu0 0.0
        %1179 = vmatprep.mubr.f32.mxu0 0.0
        %1180 = vmatmul.mubr.f32.gmra.mxu0 %v471
        %v1181 = vpop.f32.mrf.mxu0
        %v1182 = vadd.f32 0.0, %v1181
        %v1183 = vpop.f32.mrf.mxu0
        %1184 = vdwg.mxu0
        %1186 = vrot.lane.b32.xlu0 %v1182, 96
        %v1187 = vpop.permute.xlu0 %1186
        %v1188 = vsel %vm576, %v1182, 0
        %v1190 = vsel %vm576, %v1187, 0
        %1192 = vmatprep.subr.mxu0 0.0
        %1193 = vmatpush1.xpose.msra.mxu0 0.0
        %1194 = vmatprep.subr.mxu0 0.0
        %1195 = vmatpush1.xpose.msra.mxu0 0.0
        %1196 = vmatprep.subr.mxu0 0.0
        %1197 = vmatpush1.xpose.msra.mxu0 0.0
        %1198 = vmatprep.subr.mxu0 0.0
        %1199 = vmatpush1.xpose.msra.mxu0 0.0
        %1200 = vmatprep.subr.mxu0 0.0
        %1201 = vmatpush1.xpose.msra.mxu0 0.0
        %1202 = vmatprep.subr.mxu0 0.0
        %1203 = vmatpush1.xpose.msra.mxu0 0.0
        %1204 = vmatprep.subr.mxu0 0.0
        %1205 = vmatpush1.xpose.msra.mxu0 0.0
        %1206 = vmatprep.subr.mxu0 0.0
        %1207 = vmatpush1.xpose.msra.mxu0 0.0
        %1208 = vmatprep.subr.mxu0 0.0
        %1209 = vmatpush1.xpose.msra.mxu0 0.0
        %1210 = vmatprep.subr.mxu0 0.0
        %1211 = vmatpush1.xpose.msra.mxu0 0.0
        %1212 = vmatprep.subr.mxu0 0.0
        %1213 = vmatpush1.xpose.msra.mxu0 0.0
        %1214 = vmatprep.subr.mxu0 0.0
        %1215 = vmatpush1.xpose.msra.mxu0 0.0
        %1216 = vmatprep.subr.mxu0 0.0
        %1217 = vmatpush1.xpose.msra.mxu0 0.0
        %1218 = vmatprep.subr.mxu0 0.0
        %1219 = vmatpush1.xpose.msra.mxu0 0.0
        %1220 = vmatprep.subr.mxu0 0.0
        %1221 = vmatpush1.xpose.msra.mxu0 0.0
        %1222 = vmatprep.subr.mxu0 0.0
        %1223 = vmatpush1.xpose.msra.mxu0 %v1190
        %1224 = vmatprep.subr.mxu0 0.0
        %1225 = vmatpush2.xpose.msra.mxu0 0.0
        %1226 = vmatprep.subr.mxu0 0.0
        %1227 = vmatpush2.xpose.msra.mxu0 0.0
        %1228 = vmatprep.subr.mxu0 0.0
        %1229 = vmatpush2.xpose.msra.mxu0 0.0
        %1230 = vmatprep.subr.mxu0 0.0
        %1231 = vmatpush2.xpose.msra.mxu0 0.0
        %1232 = vmatprep.subr.mxu0 0.0
        %1233 = vmatpush2.xpose.msra.mxu0 0.0
        %1234 = vmatprep.subr.mxu0 0.0
        %1235 = vmatpush2.xpose.msra.mxu0 0.0
        %1236 = vmatprep.subr.mxu0 0.0
        %1237 = vmatpush2.xpose.msra.mxu0 0.0
        %1238 = vmatprep.subr.mxu0 0.0
        %1239 = vmatpush2.xpose.msra.mxu0 0.0
        %1240 = vmatprep.subr.mxu0 0.0
        %1241 = vmatpush2.xpose.msra.mxu0 0.0
        %1242 = vmatprep.subr.mxu0 0.0
        %1243 = vmatpush2.xpose.msra.mxu0 0.0
        %1244 = vmatprep.subr.mxu0 0.0
        %1245 = vmatpush2.xpose.msra.mxu0 0.0
        %1246 = vmatprep.subr.mxu0 0.0
        %1247 = vmatpush2.xpose.msra.mxu0 0.0
        %1248 = vmatprep.subr.mxu0 0.0
        %1249 = vmatpush2.xpose.msra.mxu0 0.0
        %1250 = vmatprep.subr.mxu0 0.0
        %1251 = vmatpush2.xpose.msra.mxu0 0.0
        %1252 = vmatprep.subr.mxu0 0.0
        %1253 = vmatpush2.xpose.msra.mxu0 0.0
        %1254 = vmatprep.subr.mxu0 0.0
        %1255 = vmatpush2.xpose.msra.mxu0 0.0
        %1256 = vmatprep.mubr.f32.mxu0 0.0
        %1257 = vmatmul.mubr.f32.gmra.mxu0 %v1188
        %v1258 = vpop.f32.mrf.mxu0
        %v1259 = vadd.f32 0.0, %v1258
        %v1260 = vpop.f32.mrf.mxu0
        %1261 = vdwg.mxu0
        %v1262 = vmul.f32 %v1259, 0.35355338
        %v1263 = vsel %vm576, %v1262, -inf
        %1264 = vmax.xlane.f32.xlu0 %v1263
        %v1265 = vpop.xlane.xlu0 %1264
        %v1266 = vsub.f32 %v1262, %v1265
        %v1267 = vmul.f32 %v1266, 1.442695
        %v1268 = vpow.pop %v1267
        %v1269 = vsel %vm576, %v1268, 0.0
        %1270 = vadd.xlane.f32.xlu0 %v1269
        %v1271 = vpop.xlane.xlu0 %1270
        %v1272 = vrcp.pop %v1271
        %v1273 = vmul.f32 %v1268, %v1272
        %1274 = vrot.lane.b32.xlu0 %v1182, 64
        %v1275 = vpop.permute.xlu0 %1274
        %v1278 = vsel %vm576, %v1273, 0
        %1280 = vmatprep.subr.mxu0 0.0
        %1281 = vmatpush1.msra.mxu0 0.0
        %1282 = vmatprep.subr.mxu0 0.0
        %1283 = vmatpush1.msra.mxu0 0.0
        %1284 = vmatprep.subr.mxu0 0.0
        %1285 = vmatpush1.msra.mxu0 0.0
        %1286 = vmatprep.subr.mxu0 0.0
        %1287 = vmatpush1.msra.mxu0 0.0
        %1288 = vmatprep.subr.mxu0 0.0
        %1289 = vmatpush1.msra.mxu0 0.0
        %1290 = vmatprep.subr.mxu0 0.0
        %1291 = vmatpush1.msra.mxu0 0.0
        %1292 = vmatprep.subr.mxu0 0.0
        %1293 = vmatpush1.msra.mxu0 0.0
        %1294 = vmatprep.subr.mxu0 0.0
        %1295 = vmatpush1.msra.mxu0 0.0
        %1296 = vmatprep.subr.mxu0 0.0
        %1297 = vmatpush1.msra.mxu0 0.0
        %1298 = vmatprep.subr.mxu0 0.0
        %1299 = vmatpush1.msra.mxu0 0.0
        %1300 = vmatprep.subr.mxu0 0.0
        %1301 = vmatpush1.msra.mxu0 0.0
        %1302 = vmatprep.subr.mxu0 0.0
        %1303 = vmatpush1.msra.mxu0 0.0
        %1304 = vmatprep.subr.mxu0 0.0
        %1305 = vmatpush1.msra.mxu0 0.0
        %1306 = vmatprep.subr.mxu0 0.0
        %1307 = vmatpush1.msra.mxu0 0.0
        %1308 = vmatprep.subr.mxu0 0.0
        %1309 = vmatpush1.msra.mxu0 0.0
        %1310 = vmatprep.subr.mxu0 0.0
        %1311 = vmatpush1.msra.mxu0 %v1275
        %1312 = vmatprep.subr.mxu0 0.0
        %1313 = vmatpush2.msra.mxu0 0.0
        %1314 = vmatprep.subr.mxu0 0.0
        %1315 = vmatpush2.msra.mxu0 0.0
        %1316 = vmatprep.subr.mxu0 0.0
        %1317 = vmatpush2.msra.mxu0 0.0
        %1318 = vmatprep.subr.mxu0 0.0
        %1319 = vmatpush2.msra.mxu0 0.0
        %1320 = vmatprep.subr.mxu0 0.0
        %1321 = vmatpush2.msra.mxu0 0.0
        %1322 = vmatprep.subr.mxu0 0.0
        %1323 = vmatpush2.msra.mxu0 0.0
        %1324 = vmatprep.subr.mxu0 0.0
        %1325 = vmatpush2.msra.mxu0 0.0
        %1326 = vmatprep.subr.mxu0 0.0
        %1327 = vmatpush2.msra.mxu0 0.0
        %1328 = vmatprep.subr.mxu0 0.0
        %1329 = vmatpush2.msra.mxu0 0.0
        %1330 = vmatprep.subr.mxu0 0.0
        %1331 = vmatpush2.msra.mxu0 0.0
        %1332 = vmatprep.subr.mxu0 0.0
        %1333 = vmatpush2.msra.mxu0 0.0
        %1334 = vmatprep.subr.mxu0 0.0
        %1335 = vmatpush2.msra.mxu0 0.0
        %1336 = vmatprep.subr.mxu0 0.0
        %1337 = vmatpush2.msra.mxu0 0.0
        %1338 = vmatprep.subr.mxu0 0.0
        %1339 = vmatpush2.msra.mxu0 0.0
        %1340 = vmatprep.subr.mxu0 0.0
        %1341 = vmatpush2.msra.mxu0 0.0
        %1342 = vmatprep.subr.mxu0 0.0
        %1343 = vmatpush2.msra.mxu0 0.0
        %1344 = vmatprep.mubr.f32.mxu0 0.0
        %1345 = vmatmul.mubr.f32.gmra.mxu0 %v1278
        %v1346 = vpop.f32.mrf.mxu0
        %v1347 = vadd.f32 0.0, %v1346
        %v1348 = vpop.f32.mrf.mxu0
        %1349 = vdwg.mxu0
        %1350 = vrot.lane.b32.xlu0 %v1182, 120
        %v1351 = vpop.permute.xlu0 %1350
        %1352 = vrot.lane.b32.xlu0 %v1182, 88
        %v1353 = vpop.permute.xlu0 %1352
        %v1354 = vsel %vm576, %v1351, 0
        %v1356 = vsel %vm576, %v1353, 0
        %1358 = vmatprep.subr.mxu0 0.0
        %1359 = vmatpush1.xpose.msra.mxu0 0.0
        %1360 = vmatprep.subr.mxu0 0.0
        %1361 = vmatpush1.xpose.msra.mxu0 0.0
        %1362 = vmatprep.subr.mxu0 0.0
        %1363 = vmatpush1.xpose.msra.mxu0 0.0
        %1364 = vmatprep.subr.mxu0 0.0
        %1365 = vmatpush1.xpose.msra.mxu0 0.0
        %1366 = vmatprep.subr.mxu0 0.0
        %1367 = vmatpush1.xpose.msra.mxu0 0.0
        %1368 = vmatprep.subr.mxu0 0.0
        %1369 = vmatpush1.xpose.msra.mxu0 0.0
        %1370 = vmatprep.subr.mxu0 0.0
        %1371 = vmatpush1.xpose.msra.mxu0 0.0
        %1372 = vmatprep.subr.mxu0 0.0
        %1373 = vmatpush1.xpose.msra.mxu0 0.0
        %1374 = vmatprep.subr.mxu0 0.0
        %1375 = vmatpush1.xpose.msra.mxu0 0.0
        %1376 = vmatprep.subr.mxu0 0.0
        %1377 = vmatpush1.xpose.msra.mxu0 0.0
        %1378 = vmatprep.subr.mxu0 0.0
        %1379 = vmatpush1.xpose.msra.mxu0 0.0
        %1380 = vmatprep.subr.mxu0 0.0
        %1381 = vmatpush1.xpose.msra.mxu0 0.0
        %1382 = vmatprep.subr.mxu0 0.0
        %1383 = vmatpush1.xpose.msra.mxu0 0.0
        %1384 = vmatprep.subr.mxu0 0.0
        %1385 = vmatpush1.xpose.msra.mxu0 0.0
        %1386 = vmatprep.subr.mxu0 0.0
        %1387 = vmatpush1.xpose.msra.mxu0 0.0
        %1388 = vmatprep.subr.mxu0 0.0
        %1389 = vmatpush1.xpose.msra.mxu0 %v1356
        %1390 = vmatprep.subr.mxu0 0.0
        %1391 = vmatpush2.xpose.msra.mxu0 0.0
        %1392 = vmatprep.subr.mxu0 0.0
        %1393 = vmatpush2.xpose.msra.mxu0 0.0
        %1394 = vmatprep.subr.mxu0 0.0
        %1395 = vmatpush2.xpose.msra.mxu0 0.0
        %1396 = vmatprep.subr.mxu0 0.0
        %1397 = vmatpush2.xpose.msra.mxu0 0.0
        %1398 = vmatprep.subr.mxu0 0.0
        %1399 = vmatpush2.xpose.msra.mxu0 0.0
        %1400 = vmatprep.subr.mxu0 0.0
        %1401 = vmatpush2.xpose.msra.mxu0 0.0
        %1402 = vmatprep.subr.mxu0 0.0
        %1403 = vmatpush2.xpose.msra.mxu0 0.0
        %1404 = vmatprep.subr.mxu0 0.0
        %1405 = vmatpush2.xpose.msra.mxu0 0.0
        %1406 = vmatprep.subr.mxu0 0.0
        %1407 = vmatpush2.xpose.msra.mxu0 0.0
        %1408 = vmatprep.subr.mxu0 0.0
        %1409 = vmatpush2.xpose.msra.mxu0 0.0
        %1410 = vmatprep.subr.mxu0 0.0
        %1411 = vmatpush2.xpose.msra.mxu0 0.0
        %1412 = vmatprep.subr.mxu0 0.0
        %1413 = vmatpush2.xpose.msra.mxu0 0.0
        %1414 = vmatprep.subr.mxu0 0.0
        %1415 = vmatpush2.xpose.msra.mxu0 0.0
        %1416 = vmatprep.subr.mxu0 0.0
        %1417 = vmatpush2.xpose.msra.mxu0 0.0
        %1418 = vmatprep.subr.mxu0 0.0
        %1419 = vmatpush2.xpose.msra.mxu0 0.0
        %1420 = vmatprep.subr.mxu0 0.0
        %1421 = vmatpush2.xpose.msra.mxu0 0.0
        %1422 = vmatprep.mubr.f32.mxu0 0.0
        %1423 = vmatmul.mubr.f32.gmra.mxu0 %v1354
        %v1424 = vpop.f32.mrf.mxu0
        %v1425 = vadd.f32 0.0, %v1424
        %v1426 = vpop.f32.mrf.mxu0
        %1427 = vdwg.mxu0
        %v1428 = vmul.f32 %v1425, 0.35355338
        %v1429 = vsel %vm576, %v1428, -inf
        %1430 = vmax.xlane.f32.xlu0 %v1429
        %v1431 = vpop.xlane.xlu0 %1430
        %v1432 = vsub.f32 %v1428, %v1431
        %v1433 = vmul.f32 %v1432, 1.442695
        %v1434 = vpow.pop %v1433
        %v1435 = vsel %vm576, %v1434, 0.0
        %1436 = vadd.xlane.f32.xlu0 %v1435
        %v1437 = vpop.xlane.xlu0 %1436
        %v1438 = vrcp.pop %v1437
        %v1439 = vmul.f32 %v1434, %v1438
        %1440 = vrot.lane.b32.xlu0 %v1182, 56
        %v1441 = vpop.permute.xlu0 %1440
        %v1444 = vsel %vm576, %v1439, 0
        %1446 = vmatprep.subr.mxu0 0.0
        %1447 = vmatpush1.msra.mxu0 0.0
        %1448 = vmatprep.subr.mxu0 0.0
        %1449 = vmatpush1.msra.mxu0 0.0
        %1450 = vmatprep.subr.mxu0 0.0
        %1451 = vmatpush1.msra.mxu0 0.0
        %1452 = vmatprep.subr.mxu0 0.0
        %1453 = vmatpush1.msra.mxu0 0.0
        %1454 = vmatprep.subr.mxu0 0.0
        %1455 = vmatpush1.msra.mxu0 0.0
        %1456 = vmatprep.subr.mxu0 0.0
        %1457 = vmatpush1.msra.mxu0 0.0
        %1458 = vmatprep.subr.mxu0 0.0
        %1459 = vmatpush1.msra.mxu0 0.0
        %1460 = vmatprep.subr.mxu0 0.0
        %1461 = vmatpush1.msra.mxu0 0.0
        %1462 = vmatprep.subr.mxu0 0.0
        %1463 = vmatpush1.msra.mxu0 0.0
        %1464 = vmatprep.subr.mxu0 0.0
        %1465 = vmatpush1.msra.mxu0 0.0
        %1466 = vmatprep.subr.mxu0 0.0
        %1467 = vmatpush1.msra.mxu0 0.0
        %1468 = vmatprep.subr.mxu0 0.0
        %1469 = vmatpush1.msra.mxu0 0.0
        %1470 = vmatprep.subr.mxu0 0.0
        %1471 = vmatpush1.msra.mxu0 0.0
        %1472 = vmatprep.subr.mxu0 0.0
        %1473 = vmatpush1.msra.mxu0 0.0
        %1474 = vmatprep.subr.mxu0 0.0
        %1475 = vmatpush1.msra.mxu0 0.0
        %1476 = vmatprep.subr.mxu0 0.0
        %1477 = vmatpush1.msra.mxu0 %v1441
        %1478 = vmatprep.subr.mxu0 0.0
        %1479 = vmatpush2.msra.mxu0 0.0
        %1480 = vmatprep.subr.mxu0 0.0
        %1481 = vmatpush2.msra.mxu0 0.0
        %1482 = vmatprep.subr.mxu0 0.0
        %1483 = vmatpush2.msra.mxu0 0.0
        %1484 = vmatprep.subr.mxu0 0.0
        %1485 = vmatpush2.msra.mxu0 0.0
        %1486 = vmatprep.subr.mxu0 0.0
        %1487 = vmatpush2.msra.mxu0 0.0
        %1488 = vmatprep.subr.mxu0 0.0
        %1489 = vmatpush2.msra.mxu0 0.0
        %1490 = vmatprep.subr.mxu0 0.0
        %1491 = vmatpush2.msra.mxu0 0.0
        %1492 = vmatprep.subr.mxu0 0.0
        %1493 = vmatpush2.msra.mxu0 0.0
        %1494 = vmatprep.subr.mxu0 0.0
        %1495 = vmatpush2.msra.mxu0 0.0
        %1496 = vmatprep.subr.mxu0 0.0
        %1497 = vmatpush2.msra.mxu0 0.0
        %1498 = vmatprep.subr.mxu0 0.0
        %1499 = vmatpush2.msra.mxu0 0.0
        %1500 = vmatprep.subr.mxu0 0.0
        %1501 = vmatpush2.msra.mxu0 0.0
        %1502 = vmatprep.subr.mxu0 0.0
        %1503 = vmatpush2.msra.mxu0 0.0
        %1504 = vmatprep.subr.mxu0 0.0
        %1505 = vmatpush2.msra.mxu0 0.0
        %1506 = vmatprep.subr.mxu0 0.0
        %1507 = vmatpush2.msra.mxu0 0.0
        %1508 = vmatprep.subr.mxu0 0.0
        %1509 = vmatpush2.msra.mxu0 0.0
        %1510 = vmatprep.mubr.f32.mxu0 0.0
        %1511 = vmatmul.mubr.f32.gmra.mxu0 %v1444
        %v1512 = vpop.f32.mrf.mxu0
        %v1513 = vadd.f32 0.0, %v1512
        %v1514 = vpop.f32.mrf.mxu0
        %1515 = vdwg.mxu0
        %1516 = vrot.lane.b32.xlu0 %v1182, 112
        %v1517 = vpop.permute.xlu0 %1516
        %1518 = vrot.lane.b32.xlu0 %v1182, 80
        %v1519 = vpop.permute.xlu0 %1518
        %v1520 = vsel %vm576, %v1517, 0
        %v1522 = vsel %vm576, %v1519, 0
        %1524 = vmatprep.subr.mxu0 0.0
        %1525 = vmatpush1.xpose.msra.mxu0 0.0
        %1526 = vmatprep.subr.mxu0 0.0
        %1527 = vmatpush1.xpose.msra.mxu0 0.0
        %1528 = vmatprep.subr.mxu0 0.0
        %1529 = vmatpush1.xpose.msra.mxu0 0.0
        %1530 = vmatprep.subr.mxu0 0.0
        %1531 = vmatpush1.xpose.msra.mxu0 0.0
        %1532 = vmatprep.subr.mxu0 0.0
        %1533 = vmatpush1.xpose.msra.mxu0 0.0
        %1534 = vmatprep.subr.mxu0 0.0
        %1535 = vmatpush1.xpose.msra.mxu0 0.0
        %1536 = vmatprep.subr.mxu0 0.0
        %1537 = vmatpush1.xpose.msra.mxu0 0.0
        %1538 = vmatprep.subr.mxu0 0.0
        %1539 = vmatpush1.xpose.msra.mxu0 0.0
        %1540 = vmatprep.subr.mxu0 0.0
        %1541 = vmatpush1.xpose.msra.mxu0 0.0
        %1542 = vmatprep.subr.mxu0 0.0
        %1543 = vmatpush1.xpose.msra.mxu0 0.0
        %1544 = vmatprep.subr.mxu0 0.0
        %1545 = vmatpush1.xpose.msra.mxu0 0.0
        %1546 = vmatprep.subr.mxu0 0.0
        %1547 = vmatpush1.xpose.msra.mxu0 0.0
        %1548 = vmatprep.subr.mxu0 0.0
        %1549 = vmatpush1.xpose.msra.mxu0 0.0
        %1550 = vmatprep.subr.mxu0 0.0
        %1551 = vmatpush1.xpose.msra.mxu0 0.0
        %1552 = vmatprep.subr.mxu0 0.0
        %1553 = vmatpush1.xpose.msra.mxu0 0.0
        %1554 = vmatprep.subr.mxu0 0.0
        %1555 = vmatpush1.xpose.msra.mxu0 %v1522
        %1556 = vmatprep.subr.mxu0 0.0
        %1557 = vmatpush2.xpose.msra.mxu0 0.0
        %1558 = vmatprep.subr.mxu0 0.0
        %1559 = vmatpush2.xpose.msra.mxu0 0.0
        %1560 = vmatprep.subr.mxu0 0.0
        %1561 = vmatpush2.xpose.msra.mxu0 0.0
        %1562 = vmatprep.subr.mxu0 0.0
        %1563 = vmatpush2.xpose.msra.mxu0 0.0
        %1564 = vmatprep.subr.mxu0 0.0
        %1565 = vmatpush2.xpose.msra.mxu0 0.0
        %1566 = vmatprep.subr.mxu0 0.0
        %1567 = vmatpush2.xpose.msra.mxu0 0.0
        %1568 = vmatprep.subr.mxu0 0.0
        %1569 = vmatpush2.xpose.msra.mxu0 0.0
        %1570 = vmatprep.subr.mxu0 0.0
        %1571 = vmatpush2.xpose.msra.mxu0 0.0
        %1572 = vmatprep.subr.mxu0 0.0
        %1573 = vmatpush2.xpose.msra.mxu0 0.0
        %1574 = vmatprep.subr.mxu0 0.0
        %1575 = vmatpush2.xpose.msra.mxu0 0.0
        %1576 = vmatprep.subr.mxu0 0.0
        %1577 = vmatpush2.xpose.msra.mxu0 0.0
        %1578 = vmatprep.subr.mxu0 0.0
        %1579 = vmatpush2.xpose.msra.mxu0 0.0
        %1580 = vmatprep.subr.mxu0 0.0
        %1581 = vmatpush2.xpose.msra.mxu0 0.0
        %1582 = vmatprep.subr.mxu0 0.0
        %1583 = vmatpush2.xpose.msra.mxu0 0.0
        %1584 = vmatprep.subr.mxu0 0.0
        %1585 = vmatpush2.xpose.msra.mxu0 0.0
        %1586 = vmatprep.subr.mxu0 0.0
        %1587 = vmatpush2.xpose.msra.mxu0 0.0
        %1588 = vmatprep.mubr.f32.mxu0 0.0
        %1589 = vmatmul.mubr.f32.gmra.mxu0 %v1520
        %v1590 = vpop.f32.mrf.mxu0
        %v1591 = vadd.f32 0.0, %v1590
        %v1592 = vpop.f32.mrf.mxu0
        %1593 = vdwg.mxu0
        %v1594 = vmul.f32 %v1591, 0.35355338
        %v1595 = vsel %vm576, %v1594, -inf
        %1596 = vmax.xlane.f32.xlu0 %v1595
        %v1597 = vpop.xlane.xlu0 %1596
        %v1598 = vsub.f32 %v1594, %v1597
        %v1599 = vmul.f32 %v1598, 1.442695
        %v1600 = vpow.pop %v1599
        %v1601 = vsel %vm576, %v1600, 0.0
        %1602 = vadd.xlane.f32.xlu0 %v1601
        %v1603 = vpop.xlane.xlu0 %1602
        %v1604 = vrcp.pop %v1603
        %v1605 = vmul.f32 %v1600, %v1604
        %1606 = vrot.lane.b32.xlu0 %v1182, 48
        %v1607 = vpop.permute.xlu0 %1606
        %v1610 = vsel %vm576, %v1605, 0
        %1612 = vmatprep.subr.mxu0 0.0
        %1613 = vmatpush1.msra.mxu0 0.0
        %1614 = vmatprep.subr.mxu0 0.0
        %1615 = vmatpush1.msra.mxu0 0.0
        %1616 = vmatprep.subr.mxu0 0.0
        %1617 = vmatpush1.msra.mxu0 0.0
        %1618 = vmatprep.subr.mxu0 0.0
        %1619 = vmatpush1.msra.mxu0 0.0
        %1620 = vmatprep.subr.mxu0 0.0
        %1621 = vmatpush1.msra.mxu0 0.0
        %1622 = vmatprep.subr.mxu0 0.0
        %1623 = vmatpush1.msra.mxu0 0.0
        %1624 = vmatprep.subr.mxu0 0.0
        %1625 = vmatpush1.msra.mxu0 0.0
        %1626 = vmatprep.subr.mxu0 0.0
        %1627 = vmatpush1.msra.mxu0 0.0
        %1628 = vmatprep.subr.mxu0 0.0
        %1629 = vmatpush1.msra.mxu0 0.0
        %1630 = vmatprep.subr.mxu0 0.0
        %1631 = vmatpush1.msra.mxu0 0.0
        %1632 = vmatprep.subr.mxu0 0.0
        %1633 = vmatpush1.msra.mxu0 0.0
        %1634 = vmatprep.subr.mxu0 0.0
        %1635 = vmatpush1.msra.mxu0 0.0
        %1636 = vmatprep.subr.mxu0 0.0
        %1637 = vmatpush1.msra.mxu0 0.0
        %1638 = vmatprep.subr.mxu0 0.0
        %1639 = vmatpush1.msra.mxu0 0.0
        %1640 = vmatprep.subr.mxu0 0.0
        %1641 = vmatpush1.msra.mxu0 0.0
        %1642 = vmatprep.subr.mxu0 0.0
        %1643 = vmatpush1.msra.mxu0 %v1607
        %1644 = vmatprep.subr.mxu0 0.0
        %1645 = vmatpush2.msra.mxu0 0.0
        %1646 = vmatprep.subr.mxu0 0.0
        %1647 = vmatpush2.msra.mxu0 0.0
        %1648 = vmatprep.subr.mxu0 0.0
        %1649 = vmatpush2.msra.mxu0 0.0
        %1650 = vmatprep.subr.mxu0 0.0
        %1651 = vmatpush2.msra.mxu0 0.0
        %1652 = vmatprep.subr.mxu0 0.0
        %1653 = vmatpush2.msra.mxu0 0.0
        %1654 = vmatprep.subr.mxu0 0.0
        %1655 = vmatpush2.msra.mxu0 0.0
        %1656 = vmatprep.subr.mxu0 0.0
        %1657 = vmatpush2.msra.mxu0 0.0
        %1658 = vmatprep.subr.mxu0 0.0
        %1659 = vmatpush2.msra.mxu0 0.0
        %1660 = vmatprep.subr.mxu0 0.0
        %1661 = vmatpush2.msra.mxu0 0.0
        %1662 = vmatprep.subr.mxu0 0.0
        %1663 = vmatpush2.msra.mxu0 0.0
        %1664 = vmatprep.subr.mxu0 0.0
        %1665 = vmatpush2.msra.mxu0 0.0
        %1666 = vmatprep.subr.mxu0 0.0
        %1667 = vmatpush2.msra.mxu0 0.0
        %1668 = vmatprep.subr.mxu0 0.0
        %1669 = vmatpush2.msra.mxu0 0.0
        %1670 = vmatprep.subr.mxu0 0.0
        %1671 = vmatpush2.msra.mxu0 0.0
        %1672 = vmatprep.subr.mxu0 0.0
        %1673 = vmatpush2.msra.mxu0 0.0
        %1674 = vmatprep.subr.mxu0 0.0
        %1675 = vmatpush2.msra.mxu0 0.0
        %1676 = vmatprep.mubr.f32.mxu0 0.0
        %1677 = vmatmul.mubr.f32.gmra.mxu0 %v1610
        %v1678 = vpop.f32.mrf.mxu0
        %v1679 = vadd.f32 0.0, %v1678
        %v1680 = vpop.f32.mrf.mxu0
        %1681 = vdwg.mxu0
        %1682 = vrot.lane.b32.xlu0 %v1182, 104
        %v1683 = vpop.permute.xlu0 %1682
        %1684 = vrot.lane.b32.xlu0 %v1182, 72
        %v1685 = vpop.permute.xlu0 %1684
        %v1686 = vsel %vm576, %v1683, 0
        %v1688 = vsel %vm576, %v1685, 0
        %1690 = vmatprep.subr.mxu0 0.0
        %1691 = vmatpush1.xpose.msra.mxu0 0.0
        %1692 = vmatprep.subr.mxu0 0.0
        %1693 = vmatpush1.xpose.msra.mxu0 0.0
        %1694 = vmatprep.subr.mxu0 0.0
        %1695 = vmatpush1.xpose.msra.mxu0 0.0
        %1696 = vmatprep.subr.mxu0 0.0
        %1697 = vmatpush1.xpose.msra.mxu0 0.0
        %1698 = vmatprep.subr.mxu0 0.0
        %1699 = vmatpush1.xpose.msra.mxu0 0.0
        %1700 = vmatprep.subr.mxu0 0.0
        %1701 = vmatpush1.xpose.msra.mxu0 0.0
        %1702 = vmatprep.subr.mxu0 0.0
        %1703 = vmatpush1.xpose.msra.mxu0 0.0
        %1704 = vmatprep.subr.mxu0 0.0
        %1705 = vmatpush1.xpose.msra.mxu0 0.0
        %1706 = vmatprep.subr.mxu0 0.0
        %1707 = vmatpush1.xpose.msra.mxu0 0.0
        %1708 = vmatprep.subr.mxu0 0.0
        %1709 = vmatpush1.xpose.msra.mxu0 0.0
        %1710 = vmatprep.subr.mxu0 0.0
        %1711 = vmatpush1.xpose.msra.mxu0 0.0
        %1712 = vmatprep.subr.mxu0 0.0
        %1713 = vmatpush1.xpose.msra.mxu0 0.0
        %1714 = vmatprep.subr.mxu0 0.0
        %1715 = vmatpush1.xpose.msra.mxu0 0.0
        %1716 = vmatprep.subr.mxu0 0.0
        %1717 = vmatpush1.xpose.msra.mxu0 0.0
        %1718 = vmatprep.subr.mxu0 0.0
        %1719 = vmatpush1.xpose.msra.mxu0 0.0
        %1720 = vmatprep.subr.mxu0 0.0
        %1721 = vmatpush1.xpose.msra.mxu0 %v1688
        %1722 = vmatprep.subr.mxu0 0.0
        %1723 = vmatpush2.xpose.msra.mxu0 0.0
        %1724 = vmatprep.subr.mxu0 0.0
        %1725 = vmatpush2.xpose.msra.mxu0 0.0
        %1726 = vmatprep.subr.mxu0 0.0
        %1727 = vmatpush2.xpose.msra.mxu0 0.0
        %1728 = vmatprep.subr.mxu0 0.0
        %1729 = vmatpush2.xpose.msra.mxu0 0.0
        %1730 = vmatprep.subr.mxu0 0.0
        %1731 = vmatpush2.xpose.msra.mxu0 0.0
        %1732 = vmatprep.subr.mxu0 0.0
        %1733 = vmatpush2.xpose.msra.mxu0 0.0
        %1734 = vmatprep.subr.mxu0 0.0
        %1735 = vmatpush2.xpose.msra.mxu0 0.0
        %1736 = vmatprep.subr.mxu0 0.0
        %1737 = vmatpush2.xpose.msra.mxu0 0.0
        %1738 = vmatprep.subr.mxu0 0.0
        %1739 = vmatpush2.xpose.msra.mxu0 0.0
        %1740 = vmatprep.subr.mxu0 0.0
        %1741 = vmatpush2.xpose.msra.mxu0 0.0
        %1742 = vmatprep.subr.mxu0 0.0
        %1743 = vmatpush2.xpose.msra.mxu0 0.0
        %1744 = vmatprep.subr.mxu0 0.0
        %1745 = vmatpush2.xpose.msra.mxu0 0.0
        %1746 = vmatprep.subr.mxu0 0.0
        %1747 = vmatpush2.xpose.msra.mxu0 0.0
        %1748 = vmatprep.subr.mxu0 0.0
        %1749 = vmatpush2.xpose.msra.mxu0 0.0
        %1750 = vmatprep.subr.mxu0 0.0
        %1751 = vmatpush2.xpose.msra.mxu0 0.0
        %1752 = vmatprep.subr.mxu0 0.0
        %1753 = vmatpush2.xpose.msra.mxu0 0.0
        %1754 = vmatprep.mubr.f32.mxu0 0.0
        %1755 = vmatmul.mubr.f32.gmra.mxu0 %v1686
        %v1756 = vpop.f32.mrf.mxu0
        %v1757 = vadd.f32 0.0, %v1756
        %v1758 = vpop.f32.mrf.mxu0
        %1759 = vdwg.mxu0
        %v1760 = vmul.f32 %v1757, 0.35355338
        %v1761 = vsel %vm576, %v1760, -inf
        %1762 = vmax.xlane.f32.xlu0 %v1761
        %v1763 = vpop.xlane.xlu0 %1762
        %v1764 = vsub.f32 %v1760, %v1763
        %v1765 = vmul.f32 %v1764, 1.442695
        %v1766 = vpow.pop %v1765
        %v1767 = vsel %vm576, %v1766, 0.0
        %1768 = vadd.xlane.f32.xlu0 %v1767
        %v1769 = vpop.xlane.xlu0 %1768
        %v1770 = vrcp.pop %v1769
        %v1771 = vmul.f32 %v1766, %v1770
        %1772 = vrot.lane.b32.xlu0 %v1182, 40
        %v1773 = vpop.permute.xlu0 %1772
        %v1776 = vsel %vm576, %v1771, 0
        %1778 = vmatprep.subr.mxu0 0.0
        %1779 = vmatpush1.msra.mxu0 0.0
        %1780 = vmatprep.subr.mxu0 0.0
        %1781 = vmatpush1.msra.mxu0 0.0
        %1782 = vmatprep.subr.mxu0 0.0
        %1783 = vmatpush1.msra.mxu0 0.0
        %1784 = vmatprep.subr.mxu0 0.0
        %1785 = vmatpush1.msra.mxu0 0.0
        %1786 = vmatprep.subr.mxu0 0.0
        %1787 = vmatpush1.msra.mxu0 0.0
        %1788 = vmatprep.subr.mxu0 0.0
        %1789 = vmatpush1.msra.mxu0 0.0
        %1790 = vmatprep.subr.mxu0 0.0
        %1791 = vmatpush1.msra.mxu0 0.0
        %1792 = vmatprep.subr.mxu0 0.0
        %1793 = vmatpush1.msra.mxu0 0.0
        %1794 = vmatprep.subr.mxu0 0.0
        %1795 = vmatpush1.msra.mxu0 0.0
        %1796 = vmatprep.subr.mxu0 0.0
        %1797 = vmatpush1.msra.mxu0 0.0
        %1798 = vmatprep.subr.mxu0 0.0
        %1799 = vmatpush1.msra.mxu0 0.0
        %1800 = vmatprep.subr.mxu0 0.0
        %1801 = vmatpush1.msra.mxu0 0.0
        %1802 = vmatprep.subr.mxu0 0.0
        %1803 = vmatpush1.msra.mxu0 0.0
        %1804 = vmatprep.subr.mxu0 0.0
        %1805 = vmatpush1.msra.mxu0 0.0
        %1806 = vmatprep.subr.mxu0 0.0
        %1807 = vmatpush1.msra.mxu0 0.0
        %1808 = vmatprep.subr.mxu0 0.0
        %1809 = vmatpush1.msra.mxu0 %v1773
        %1810 = vmatprep.subr.mxu0 0.0
        %1811 = vmatpush2.msra.mxu0 0.0
        %1812 = vmatprep.subr.mxu0 0.0
        %1813 = vmatpush2.msra.mxu0 0.0
        %1814 = vmatprep.subr.mxu0 0.0
        %1815 = vmatpush2.msra.mxu0 0.0
        %1816 = vmatprep.subr.mxu0 0.0
        %1817 = vmatpush2.msra.mxu0 0.0
        %1818 = vmatprep.subr.mxu0 0.0
        %1819 = vmatpush2.msra.mxu0 0.0
        %1820 = vmatprep.subr.mxu0 0.0
        %1821 = vmatpush2.msra.mxu0 0.0
        %1822 = vmatprep.subr.mxu0 0.0
        %1823 = vmatpush2.msra.mxu0 0.0
        %1824 = vmatprep.subr.mxu0 0.0
        %1825 = vmatpush2.msra.mxu0 0.0
        %1826 = vmatprep.subr.mxu0 0.0
        %1827 = vmatpush2.msra.mxu0 0.0
        %1828 = vmatprep.subr.mxu0 0.0
        %1829 = vmatpush2.msra.mxu0 0.0
        %1830 = vmatprep.subr.mxu0 0.0
        %1831 = vmatpush2.msra.mxu0 0.0
        %1832 = vmatprep.subr.mxu0 0.0
        %1833 = vmatpush2.msra.mxu0 0.0
        %1834 = vmatprep.subr.mxu0 0.0
        %1835 = vmatpush2.msra.mxu0 0.0
        %1836 = vmatprep.subr.mxu0 0.0
        %1837 = vmatpush2.msra.mxu0 0.0
        %1838 = vmatprep.subr.mxu0 0.0
        %1839 = vmatpush2.msra.mxu0 0.0
        %1840 = vmatprep.subr.mxu0 0.0
        %1841 = vmatpush2.msra.mxu0 0.0
        %1842 = vmatprep.mubr.f32.mxu0 0.0
        %1843 = vmatmul.mubr.f32.gmra.mxu0 %v1776
        %v1844 = vpop.f32.mrf.mxu0
        %v1845 = vadd.f32 0.0, %v1844
        %v1846 = vpop.f32.mrf.mxu0
        %1847 = vdwg.mxu0
        %1849 = vrot.lane.b32.xlu0 %v1513, 8
        %v1850 = vpop.permute.xlu0 %1849
        %1853 = vrot.lane.b32.xlu0 %v1679, 16
        %v1854 = vpop.permute.xlu0 %1853
        %1857 = vrot.lane.b32.xlu0 %v1845, 24
        %v1858 = vpop.permute.xlu0 %1857
        %v1860 = vsel %vm576, %v1347, %v1850
        %v1861 = vsel %vm779, %v1860, %v1854
        %vm1862 = vcmask 195584
        %v1863 = vsel %vm1862, %v1861, %v1858
        %v1864 = vmul.f32 %v1110, 0.4
        %v1865 = vmul.f32 %v1863, 0.6
        %v1866 = vadd.f32 %v1864, %v1865
        %v1867 = vld [vmem:[%s13] sm:$0xff]
        %v1868 = vld [vmem:[%s13 + $0x8] sm:$0xff]
        %v1869 = vld [vmem:[%s13 + $0x10] sm:$0xff]
        %v1870 = vld [vmem:[%s13 + $0x18] sm:$0xff]
        %v1872 = vsel %vm466, %v1866, 0
        %1874 = vmatprep.subr.mxu0 0.0
        %1875 = vmatpush1.msra.mxu0 0.0
        %1876 = vmatprep.subr.mxu0 0.0
        %1877 = vmatpush1.msra.mxu0 0.0
        %1878 = vmatprep.subr.mxu0 0.0
        %1879 = vmatpush1.msra.mxu0 0.0
        %1880 = vmatprep.subr.mxu0 0.0
        %1881 = vmatpush1.msra.mxu0 0.0
        %1882 = vmatprep.subr.mxu0 0.0
        %1883 = vmatpush1.msra.mxu0 0.0
        %1884 = vmatprep.subr.mxu0 0.0
        %1885 = vmatpush1.msra.mxu0 0.0
        %1886 = vmatprep.subr.mxu0 0.0
        %1887 = vmatpush1.msra.mxu0 0.0
        %1888 = vmatprep.subr.mxu0 0.0
        %1889 = vmatpush1.msra.mxu0 0.0
        %1890 = vmatprep.subr.mxu0 0.0
        %1891 = vmatpush1.msra.mxu0 0.0
        %1892 = vmatprep.subr.mxu0 0.0
        %1893 = vmatpush1.msra.mxu0 0.0
        %1894 = vmatprep.subr.mxu0 0.0
        %1895 = vmatpush1.msra.mxu0 0.0
        %1896 = vmatprep.subr.mxu0 0.0
        %1897 = vmatpush1.msra.mxu0 0.0
        %1898 = vmatprep.subr.mxu0 0.0
        %1899 = vmatpush1.msra.mxu0 %v1870
        %1900 = vmatprep.subr.mxu0 0.0
        %1901 = vmatpush1.msra.mxu0 %v1869
        %1902 = vmatprep.subr.mxu0 0.0
        %1903 = vmatpush1.msra.mxu0 %v1868
        %1904 = vmatprep.subr.mxu0 0.0
        %1905 = vmatpush1.msra.mxu0 %v1867
        %1906 = vmatprep.subr.mxu0 0.0
        %1907 = vmatpush2.msra.mxu0 0.0
        %1908 = vmatprep.subr.mxu0 0.0
        %1909 = vmatpush2.msra.mxu0 0.0
        %1910 = vmatprep.subr.mxu0 0.0
        %1911 = vmatpush2.msra.mxu0 0.0
        %1912 = vmatprep.subr.mxu0 0.0
        %1913 = vmatpush2.msra.mxu0 0.0
        %1914 = vmatprep.subr.mxu0 0.0
        %1915 = vmatpush2.msra.mxu0 0.0
        %1916 = vmatprep.subr.mxu0 0.0
        %1917 = vmatpush2.msra.mxu0 0.0
        %1918 = vmatprep.subr.mxu0 0.0
        %1919 = vmatpush2.msra.mxu0 0.0
        %1920 = vmatprep.subr.mxu0 0.0
        %1921 = vmatpush2.msra.mxu0 0.0
        %1922 = vmatprep.subr.mxu0 0.0
        %1923 = vmatpush2.msra.mxu0 0.0
        %1924 = vmatprep.subr.mxu0 0.0
        %1925 = vmatpush2.msra.mxu0 0.0
        %1926 = vmatprep.subr.mxu0 0.0
        %1927 = vmatpush2.msra.mxu0 0.0
        %1928 = vmatprep.subr.mxu0 0.0
        %1929 = vmatpush2.msra.mxu0 0.0
        %1930 = vmatprep.subr.mxu0 0.0
        %1931 = vmatpush2.msra.mxu0 0.0
        %1932 = vmatprep.subr.mxu0 0.0
        %1933 = vmatpush2.msra.mxu0 0.0
        %1934 = vmatprep.subr.mxu0 0.0
        %1935 = vmatpush2.msra.mxu0 0.0
        %1936 = vmatprep.subr.mxu0 0.0
        %1937 = vmatpush2.msra.mxu0 0.0
        %1938 = vmatprep.mubr.f32.mxu0 0.0
        %1939 = vmatmul.mubr.f32.gmra.mxu0 %v1872
        %v1940 = vpop.f32.mrf.mxu0
        %v1941 = vadd.f32 0.0, %v1940
        %v1942 = vpop.f32.mrf.mxu0
        %1943 = vdwg.mxu0
        %1944 = vst.msk [vmem:[%s458] sm:$0xff] %vm466, %v1941
        %s1945 = sand.u32 %s335, 1
        %s1946 = scalar_lea.sflag [#allocation3], %s1945
        %s1947 = sand.u32 %s335, 1
        %s1948 = smul.addr %s1947, 8
        %s1949 = scalar_lea.vmem [#allocation2], %s1948
        // Predicated region
        $region77: #{splatflow_attention.1} parent=75 // pred_check
          %p1950 = pneg %p345
        $region78: #{splatflow_attention.1} parent=75 // pred_check_branch
          %1952 = sbr.rel (%p1950) target = $region80
        $region79: #{splatflow_attention.1} parent=75 // pred_region
          %s1954 = ssub.s32 128, 128
          %1955 = vsyncadd %s1946, %s1954
          %s1956 = smul.addr %s28, 128
          %s1957 = scalar_lea.hbm %s14, %s1956
          %s1959 = sshll.u32 %s1949, 4
          %s1960 = int_to_ptr.vmem [resolvable:$true] %s1959
          %1962 = dma.vmem_to_hbm [thread:$0]  %s1960, 128, %s1957, %s1946
        $region80: #{splatflow_attention.1} parent=75 // pred_fallthru
          _
      $region76: #{splatflow_attention.1} parent=5 // pred_fallthru
        _
      %p1963 = scmp.le.s32.totalorder 2, %s23
      // Predicated region
      $region81: #{splatflow_attention.1} parent=5 // pred_check
        %p1964 = pneg %p1963
      $region82: #{splatflow_attention.1} parent=5 // pred_check_branch
        %1966 = sbr.rel (%p1964) target = $region84
      $region83: #{splatflow_attention.1} parent=5 // pred_region
        %s1967 = ssub.s32 %s23, 2
        // Predicated region
        $region85: #{splatflow_attention.1} parent=83 // pred_check
          %p1968 = pneg %p351
        $region86: #{splatflow_attention.1} parent=83 // pred_check_branch
          %1970 = sbr.rel (%p1968) target = $region88
        $region87: #{splatflow_attention.1} parent=83 // pred_region
          %s1971 = sand.u32 %s336, 1
          %s1972 = scalar_lea.sflag [#allocation3], %s1971
          %s1973 = sand.u32 %s336, 1
          %s1974 = smul.addr %s1973, 8
          %s1975 = scalar_lea.vmem [#allocation2], %s1974
          %1976 = dma.done %s1972, 128
        $region88: #{splatflow_attention.1} parent=83 // pred_fallthru
          _
      $region84: #{splatflow_attention.1} parent=5 // pred_fallthru
        _
    $region6: #{splatflow_attention.1} parent=1 // loop_footer
      %s27 = sadd.s32 1, %s23
    $region7: #{splatflow_attention.1} parent=1 // loop_footer_branch
      %22 = sbr.rel target = $region3
    $region8: #{splatflow_attention.1} parent=1 // loop_exit
      _
    %1977 = vsyncpa [#allocation3], 1
    %s1978 = scalar_lea.sflag [#allocation3], 1
    %1979 = vsyncpa %s1978, 1

</llo_original>
